<compile_context>
chip_gen: v7x
topology: tpu7x:2x2x1
jax: 0.10.0
libtpu: 0.0.40
codegen_flags: <defaults>
</compile_context>

<pallas_src>
import jax
import jax.numpy as jnp
from jax.experimental import pallas as pl
from jax.experimental.pallas import tpu as pltpu


Z_DIM = 8                      # VaeConfig.z_dim
HIDDEN = 128                   # MLP hidden width (lane-aligned)
MAX_BLOCK_B = 256              # max batch tile: full-height MXU operand on v6e/v7x
XHAT_DTYPE = jnp.float32       # flip to jnp.bfloat16 if downstream loss tolerates it
                               # (halves the largest HBM stream; precision change)
VMEM_TILE_BUDGET = 24 * 1024 * 1024   # keep double-buffered streams well under v7x's 64 MiB


def _round_up(x, m):
    return (x + m - 1) // m * m


def _tile_vmem_bytes(tb, d_pad, x_itemsize):
    """Rough double-buffered VMEM footprint for one batch tile (+ resident weights)."""
    xhat_itemsize = jnp.dtype(XHAT_DTYPE).itemsize
    per_tile = 2 * tb * (d_pad * (x_itemsize + xhat_itemsize) + 4 * (Z_DIM + 3 * Z_DIM))
    weights = 2 * 2 * (2 * d_pad * HIDDEN)          # ew1 + dw2 (bf16), x2 buffers
    return per_tile + weights


def _pick_batch_tile(b8, d_pad, x_itemsize):
    """Largest multiple-of-8 tile (<= MAX_BLOCK_B) minimizing padded rows, then split
    once for v7x megacore if there would be a single tile, then clamp for VMEM."""
    best_tb, best_pad = 8, _round_up(b8, 8)
    for tb in range(8, min(b8, MAX_BLOCK_B) + 1, 8):
        b_pad = _round_up(b8, tb)
        if b_pad < best_pad or (b_pad == best_pad and tb > best_tb):
            best_tb, best_pad = tb, b_pad
    # A single batch tile leaves one of v7x's two TensorCores idle -> split in two.
    if best_pad // best_tb == 1 and best_tb % 16 == 0:
        best_tb //= 2
    # Shrink the tile if the double-buffered streams would not fit the VMEM budget.
    while best_tb > 8 and _tile_vmem_bytes(best_tb, d_pad, x_itemsize) > VMEM_TILE_BUDGET:
        best_tb = max(8, (best_tb // 2 + 7) // 8 * 8)
    return best_tb, _round_up(b8, best_tb)


def _vae_kernel(x_ref, eps_ref,
                ew1_ref, eb1_ref, ew2_ref, eb2_ref,
                dw1_ref, db1_ref, dw2_ref, db2_ref,
                xhat_ref, lat_ref):
    """One (TB, D_pad) batch tile: encoder -> reparameterize -> decoder."""
    # Cast at the MXU boundary (no-op when the wrapper already shipped bf16).
    x = x_ref[...].astype(jnp.bfloat16)                            # (TB, D_pad)

    # ---- encoder: Linear -> ReLU -> fused (mu | log_var) head ---------------
    h = jnp.dot(x, ew1_ref[...], preferred_element_type=jnp.float32) + eb1_ref[...]
    h = jnp.maximum(h, 0.0)                                        # f32 (TB, HIDDEN)
    mu_lv = jnp.dot(h.astype(jnp.bfloat16), ew2_ref[...],
                    preferred_element_type=jnp.float32) + eb2_ref[...]   # (TB, 2*Z_DIM)
    mu = mu_lv[:, :Z_DIM]                                          # static lane slice
    log_var = mu_lv[:, Z_DIM:]

    # ---- reparameterize (training-mode branch), f32 elementwise -------------
    std = jnp.exp(0.5 * log_var)                                   # EUP
    z = mu + eps_ref[...] * std                                    # (TB, Z_DIM) f32

    # ---- decoder: Linear -> ReLU -> Linear ----------------------------------
    hd = jnp.dot(z.astype(jnp.bfloat16), dw1_ref[...],
                 preferred_element_type=jnp.float32) + db1_ref[...]
    hd = jnp.maximum(hd, 0.0)
    x_hat = jnp.dot(hd.astype(jnp.bfloat16), dw2_ref[...],
                    preferred_element_type=jnp.float32) + db2_ref[...]

    xhat_ref[...] = x_hat.astype(xhat_ref.dtype)
    # Single packed small-output stream: [z | mu | log_var].
    lat_ref[...] = jnp.concatenate([z, mu_lv], axis=-1)


@jax.jit
def vae_forward(x_nchw, eps, params):
    """Returns (x_hat, z, mu, log_var) matching Vae.forward (training) semantics."""
    B, C, H, W = x_nchw.shape
    D = C * H * W
    D_pad = _round_up(D, 128)
    B8 = _round_up(B, 8)

    TB, B_pad = _pick_batch_tile(B8, D_pad, x_itemsize=4)
    n_tiles = B_pad // TB

    x2d = x_nchw.reshape(B, D).astype(jnp.float32)      # free view (contiguous reshape)
    needs_pad = (D_pad != D) or (B_pad != B)
    if needs_pad:
        # Single fused cast+pad pass producing bf16 directly (not pad(f32)+astype).
        x_in = jnp.pad(x2d.astype(jnp.bfloat16), ((0, B_pad - B), (0, D_pad - D)))
        eps_in = jnp.pad(eps.astype(jnp.float32), ((0, B_pad - B), (0, 0)))
    else:
        # No wrapper HBM pass over x at all; the kernel casts to bf16 at the MXU.
        x_in = x2d
        eps_in = eps.astype(jnp.float32)

    ew1, eb1, ew2, eb2, dw1, db1, dw2, db2 = params
    ew1_b = jnp.pad(ew1, ((0, D_pad - D), (0, 0))).astype(jnp.bfloat16)
    eb1_f = eb1.astype(jnp.float32)
    ew2_b = ew2.astype(jnp.bfloat16)                    # fused (HIDDEN, 2*Z_DIM) head
    eb2_f = eb2.astype(jnp.float32)
    dw1_b = dw1.astype(jnp.bfloat16)
    db1_f = db1.astype(jnp.float32)
    dw2_b = jnp.pad(dw2, ((0, 0), (0, D_pad - D))).astype(jnp.bfloat16)
    db2_f = jnp.pad(db2.astype(jnp.float32), ((0, 0), (0, D_pad - D)))
    weight_arrays = (ew1_b, eb1_f, ew2_b, eb2_f, dw1_b, db1_f, dw2_b, db2_f)

    batch_map = lambda i: (i, 0)    # batch-tiled operands
    const_map = lambda i: (0, 0)    # VMEM-resident weights/biases (fetched once)

    in_specs = (
        [pl.BlockSpec((TB, D_pad), batch_map),                 # x
         pl.BlockSpec((TB, Z_DIM), batch_map)]                 # eps
        + [pl.BlockSpec(a.shape, const_map) for a in weight_arrays])

    out_shape = (
        jax.ShapeDtypeStruct((B_pad, D_pad), XHAT_DTYPE),      # x_hat (flat, padded)
        jax.ShapeDtypeStruct((B_pad, 3 * Z_DIM), jnp.float32), # packed [z | mu | log_var]
    )
    out_specs = (
        pl.BlockSpec((TB, D_pad), batch_map),
        pl.BlockSpec((TB, 3 * Z_DIM), batch_map),
    )

    flops = 2 * B_pad * (D_pad * HIDDEN            # encoder L1
                         + HIDDEN * 2 * Z_DIM      # fused mu/log_var head
                         + Z_DIM * HIDDEN          # decoder L1
                         + HIDDEN * D_pad)         # decoder L2
    bytes_accessed = (int(x_in.size) * x_in.dtype.itemsize
                      + int(eps_in.size) * 4
                      + sum(int(a.size) * a.dtype.itemsize for a in weight_arrays)
                      + B_pad * D_pad * jnp.dtype(XHAT_DTYPE).itemsize
                      + B_pad * 3 * Z_DIM * 4)
    cost = pl.CostEstimate(flops=int(flops),
                           transcendentals=int(B_pad * Z_DIM),
                           bytes_accessed=int(bytes_accessed))

    x_hat_flat, lat = pl.pallas_call(
        _vae_kernel,
        grid=(n_tiles,),
        in_specs=in_specs,
        out_specs=out_specs,
        out_shape=out_shape,
        compiler_params=pltpu.CompilerParams(
            dimension_semantics=("parallel",),      # shard batch tiles across TCs (v7x)
            vmem_limit_bytes=32 * 1024 * 1024),
        cost_estimate=cost,
    )(x_in, eps_in, *weight_arrays)

    if needs_pad:
        x_hat = x_hat_flat[:B, :D].reshape(B, C, H, W)
        lat = lat[:B]
    else:
        x_hat = x_hat_flat.reshape(B, C, H, W)      # no post-kernel copy pass
    z = lat[:, :Z_DIM]
    mu = lat[:, Z_DIM:2 * Z_DIM]
    log_var = lat[:, 2 * Z_DIM:]
    return x_hat, z, mu, log_var


def init_params(key, d_in, hidden, z_dim):
    """Deterministic PyTorch-Linear-style init (uniform ±1/sqrt(fan_in))."""
    ks = jax.random.split(key, 8)

    def lin(kw, kb, fan_in, fan_out):
        bound = 1.0 / jnp.sqrt(jnp.float32(fan_in))
        w = jax.random.uniform(kw, (fan_in, fan_out), jnp.float32, -bound, bound)
        b = jax.random.uniform(kb, (1, fan_out), jnp.float32, -bound, bound)
        return w, b

    ew1, eb1 = lin(ks[0], ks[1], d_in, hidden)        # encoder layer 1
    ew2, eb2 = lin(ks[2], ks[3], hidden, 2 * z_dim)   # encoder layer 2 -> latents
    dw1, db1 = lin(ks[4], ks[5], z_dim, hidden)       # decoder layer 1
    dw2, db2 = lin(ks[6], ks[7], hidden, d_in)        # decoder layer 2 -> x_hat
    return (ew1, eb1, ew2, eb2, dw1, db1, dw2, db2)


def reference_forward(x_nchw, eps, params):
    """Pure-JAX reference mirroring the kernel numerics (bf16 MXU operands,
    f32 accumulation / elementwise). Note: validates self-consistency with the
    kernel's bf16-operand matmuls, not full-f32 PyTorch numerics."""
    B, C, H, W = x_nchw.shape
    D = C * H * W
    bf = jnp.bfloat16
    x = x_nchw.reshape(B, D).astype(jnp.float32)
    ew1, eb1, ew2, eb2, dw1, db1, dw2, db2 = params

    def mm(a, b):
        return jnp.dot(a.astype(bf), b.astype(bf),
                       preferred_element_type=jnp.float32)

    h = jnp.maximum(mm(x, ew1) + eb1, 0.0)
    mu_lv = mm(h, ew2) + eb2
    mu, log_var = mu_lv[:, :Z_DIM], mu_lv[:, Z_DIM:]
    z = mu + eps * jnp.exp(0.5 * log_var)
    hd = jnp.maximum(mm(z, dw1) + db1, 0.0)
    x_hat = (mm(hd, dw2) + db2).astype(XHAT_DTYPE).astype(jnp.float32).reshape(B, C, H, W)
    return x_hat, z, mu, log_var


def _run_case(key, B, C, Himg, Wimg):
    D = C * Himg * Wimg
    kx, keps, kp = jax.random.split(key, 3)
    x = jax.random.normal(kx, (B, C, Himg, Wimg), jnp.float32)   # NCHW, like PyTorch
    eps = jax.random.normal(keps, (B, Z_DIM), jnp.float32)       # reparam noise
    params = init_params(kp, D, HIDDEN, Z_DIM)

    outs = jax.block_until_ready(vae_forward(x, eps, params))
    refs = reference_forward(x, eps, params)
    for got, want in zip(outs, refs):
        assert got.shape == want.shape, (got.shape, want.shape)
        assert jnp.allclose(got.astype(jnp.float32), want, atol=2e-3, rtol=2e-3), \
            "mismatch vs reference"


if __name__ == "__main__":
    key = jax.random.PRNGKey(0)
    k1, k2, k3 = jax.random.split(key, 3)

    # Small shape consistent with the module (batch=2, channels=4, spatial=16):
    # batch padded 2 -> 8, D already lane-aligned (fused bf16 pad path).
    _run_case(k1, B=2, C=4, Himg=16, Wimg=16)
    # Fully aligned batch: zero-copy f32 input path + 2 batch tiles (megacore split).
    _run_case(k2, B=48, C=4, Himg=16, Wimg=16)
    # Non-lane-aligned feature dim: exercises the D padding path (D=75 -> 128).
    _run_case(k3, B=2, C=3, Himg=5, Wimg=5)

    print("KERNEL_OK")
</pallas_src>

<mosaic_0001>
module attributes {stable_mosaic.version = 11 : i64} {
  func.func @_vae_kernel(%arg0: i32, %arg1: memref<8x1024xbf16, #tpu.memory_space<vmem>>, %arg2: memref<8x8xf32, #tpu.memory_space<vmem>>, %arg3: memref<1024x128xbf16, #tpu.memory_space<vmem>>, %arg4: memref<1x128xf32, #tpu.memory_space<vmem>>, %arg5: memref<128x16xbf16, #tpu.memory_space<vmem>>, %arg6: memref<1x16xf32, #tpu.memory_space<vmem>>, %arg7: memref<8x128xbf16, #tpu.memory_space<vmem>>, %arg8: memref<1x128xf32, #tpu.memory_space<vmem>>, %arg9: memref<128x1024xbf16, #tpu.memory_space<vmem>>, %arg10: memref<1x1024xf32, #tpu.memory_space<vmem>>, %arg11: memref<8x1024xf32, #tpu.memory_space<vmem>>, %arg12: memref<8x24xf32, #tpu.memory_space<vmem>>) attributes {dimension_semantics = [#tpu.dimension_semantics<parallel>], iteration_bounds = array<i64: 1>, scalar_prefetch = 0 : i64, scratch_operands = 0 : i64, tpu.core_type = #tpu.core_type<tc>, window_params = [{transform_indices = @transform_0, window_bounds = array<i64: 8, 1024>}, {transform_indices = @transform_1, window_bounds = array<i64: 8, 8>}, {pipeline_mode = #tpu.pipeline_mode<synchronous>, transform_indices = @transform_2, window_bounds = array<i64: 1024, 128>}, {pipeline_mode = #tpu.pipeline_mode<synchronous>, transform_indices = @transform_3, window_bounds = array<i64: 1, 128>}, {pipeline_mode = #tpu.pipeline_mode<synchronous>, transform_indices = @transform_4, window_bounds = array<i64: 128, 16>}, {pipeline_mode = #tpu.pipeline_mode<synchronous>, transform_indices = @transform_5, window_bounds = array<i64: 1, 16>}, {pipeline_mode = #tpu.pipeline_mode<synchronous>, transform_indices = @transform_6, window_bounds = array<i64: 8, 128>}, {pipeline_mode = #tpu.pipeline_mode<synchronous>, transform_indices = @transform_7, window_bounds = array<i64: 1, 128>}, {pipeline_mode = #tpu.pipeline_mode<synchronous>, transform_indices = @transform_8, window_bounds = array<i64: 128, 1024>}, {pipeline_mode = #tpu.pipeline_mode<synchronous>, transform_indices = @transform_9, window_bounds = array<i64: 1, 1024>}, {transform_indices = @transform_10, window_bounds = array<i64: 8, 1024>}, {transform_indices = @transform_11, window_bounds = array<i64: 8, 24>}]} {
    %c0 = arith.constant 0 : index
    %c0_0 = arith.constant 0 : index
    %0 = vector.load %arg1[%c0, %c0_0] : memref<8x1024xbf16, #tpu.memory_space<vmem>>, vector<8x1024xbf16>
    %c0_1 = arith.constant 0 : index
    %c0_2 = arith.constant 0 : index
    %1 = vector.load %arg3[%c0_1, %c0_2] : memref<1024x128xbf16, #tpu.memory_space<vmem>>, vector<1024x128xbf16>
    %cst = arith.constant dense<0.000000e+00> : vector<8x128xf32>
    %2 = tpu.matmul %0, %1, %cst {dimension_numbers = #tpu.dot_dimension_numbers<[1], [0], [0], [1], [0, 0, 1, 1], [], []>} : vector<8x1024xbf16>, vector<1024x128xbf16>, vector<8x128xf32> -> vector<8x128xf32>
    %c0_3 = arith.constant 0 : index
    %c0_4 = arith.constant 0 : index
    %3 = vector.load %arg4[%c0_3, %c0_4] : memref<1x128xf32, #tpu.memory_space<vmem>>, vector<1x128xf32>
    %4 = vector.broadcast %3 : vector<1x128xf32> to vector<8x128xf32>
    %5 = arith.addf %2, %4 : vector<8x128xf32>
    %cst_5 = arith.constant 0.000000e+00 : f32
    %6 = vector.broadcast %cst_5 : f32 to vector<8x128xf32>
    %7 = arith.maximumf %5, %6 : vector<8x128xf32>
    %8 = arith.truncf %7 : vector<8x128xf32> to vector<8x128xbf16>
    %c0_6 = arith.constant 0 : index
    %c0_7 = arith.constant 0 : index
    %9 = vector.load %arg5[%c0_6, %c0_7] : memref<128x16xbf16, #tpu.memory_space<vmem>>, vector<128x16xbf16>
    %cst_8 = arith.constant dense<0.000000e+00> : vector<8x16xf32>
    %10 = tpu.matmul %8, %9, %cst_8 {dimension_numbers = #tpu.dot_dimension_numbers<[1], [0], [0], [1], [0, 0, 1, 1], [], []>} : vector<8x128xbf16>, vector<128x16xbf16>, vector<8x16xf32> -> vector<8x16xf32>
    %c0_9 = arith.constant 0 : index
    %c0_10 = arith.constant 0 : index
    %11 = vector.load %arg6[%c0_9, %c0_10] : memref<1x16xf32, #tpu.memory_space<vmem>>, vector<1x16xf32>
    %12 = vector.broadcast %11 : vector<1x16xf32> to vector<8x16xf32>
    %13 = arith.addf %10, %12 : vector<8x16xf32>
    %14 = vector.extract_strided_slice %13 {offsets = [0, 0], sizes = [8, 8], strides = [1, 1]} : vector<8x16xf32> to vector<8x8xf32>
    %15 = vector.extract_strided_slice %13 {offsets = [0, 8], sizes = [8, 8], strides = [1, 1]} : vector<8x16xf32> to vector<8x8xf32>
    %cst_11 = arith.constant 5.000000e-01 : f32
    %16 = vector.broadcast %cst_11 : f32 to vector<8x8xf32>
    %17 = arith.mulf %16, %15 : vector<8x8xf32>
    %18 = math.exp %17 : vector<8x8xf32>
    %c0_12 = arith.constant 0 : index
    %c0_13 = arith.constant 0 : index
    %19 = vector.load %arg2[%c0_12, %c0_13] : memref<8x8xf32, #tpu.memory_space<vmem>>, vector<8x8xf32>
    %20 = arith.mulf %19, %18 : vector<8x8xf32>
    %21 = arith.addf %14, %20 : vector<8x8xf32>
    %22 = arith.truncf %21 : vector<8x8xf32> to vector<8x8xbf16>
    %c0_14 = arith.constant 0 : index
    %c0_15 = arith.constant 0 : index
    %23 = vector.load %arg7[%c0_14, %c0_15] : memref<8x128xbf16, #tpu.memory_space<vmem>>, vector<8x128xbf16>
    %cst_16 = arith.constant dense<0.000000e+00> : vector<8x128xf32>
    %24 = tpu.matmul %22, %23, %cst_16 {dimension_numbers = #tpu.dot_dimension_numbers<[1], [0], [0], [1], [0, 0, 1, 1], [], []>} : vector<8x8xbf16>, vector<8x128xbf16>, vector<8x128xf32> -> vector<8x128xf32>
    %c0_17 = arith.constant 0 : index
    %c0_18 = arith.constant 0 : index
    %25 = vector.load %arg8[%c0_17, %c0_18] : memref<1x128xf32, #tpu.memory_space<vmem>>, vector<1x128xf32>
    %26 = vector.broadcast %25 : vector<1x128xf32> to vector<8x128xf32>
    %27 = arith.addf %24, %26 : vector<8x128xf32>
    %cst_19 = arith.constant 0.000000e+00 : f32
    %28 = vector.broadcast %cst_19 : f32 to vector<8x128xf32>
    %29 = arith.maximumf %27, %28 : vector<8x128xf32>
    %30 = arith.truncf %29 : vector<8x128xf32> to vector<8x128xbf16>
    %c0_20 = arith.constant 0 : index
    %c0_21 = arith.constant 0 : index
    %31 = vector.load %arg9[%c0_20, %c0_21] : memref<128x1024xbf16, #tpu.memory_space<vmem>>, vector<128x1024xbf16>
    %cst_22 = arith.constant dense<0.000000e+00> : vector<8x1024xf32>
    %32 = tpu.matmul %30, %31, %cst_22 {dimension_numbers = #tpu.dot_dimension_numbers<[1], [0], [0], [1], [0, 0, 1, 1], [], []>} : vector<8x128xbf16>, vector<128x1024xbf16>, vector<8x1024xf32> -> vector<8x1024xf32>
    %c0_23 = arith.constant 0 : index
    %c0_24 = arith.constant 0 : index
    %33 = vector.load %arg10[%c0_23, %c0_24] : memref<1x1024xf32, #tpu.memory_space<vmem>>, vector<1x1024xf32>
    %34 = vector.broadcast %33 : vector<1x1024xf32> to vector<8x1024xf32>
    %35 = arith.addf %32, %34 : vector<8x1024xf32>
    %c0_25 = arith.constant 0 : index
    %c0_26 = arith.constant 0 : index
    %36 = vector.load %arg11[%c0_25, %c0_26] : memref<8x1024xf32, #tpu.memory_space<vmem>>, vector<8x1024xf32>
    tpu.vector_store %arg11[%c0_25, %c0_26], %35 {strides = array<i32>} : memref<8x1024xf32, #tpu.memory_space<vmem>>, vector<8x1024xf32>,
    %37 = tpu.concatenate %21, %13 in 1 : vector<8x8xf32>, vector<8x16xf32> -> vector<8x24xf32>
    %c0_27 = arith.constant 0 : index
    %c0_28 = arith.constant 0 : index
    %38 = vector.load %arg12[%c0_27, %c0_28] : memref<8x24xf32, #tpu.memory_space<vmem>>, vector<8x24xf32>
    tpu.vector_store %arg12[%c0_27, %c0_28], %37 {strides = array<i32>} : memref<8x24xf32, #tpu.memory_space<vmem>>, vector<8x24xf32>,
    return
  }
  func.func @transform_0(%arg0: i32) -> (i32, i32) {
    %c0_i32 = arith.constant 0 : i32
    %c0_i32_0 = arith.constant 0 : i32
    return %arg0, %c0_i32 : i32, i32
  }
  func.func @transform_1(%arg0: i32) -> (i32, i32) {
    %c0_i32 = arith.constant 0 : i32
    %c0_i32_0 = arith.constant 0 : i32
    return %arg0, %c0_i32 : i32, i32
  }
  func.func @transform_2(%arg0: i32) -> (i32, i32) {
    %c0_i32 = arith.constant 0 : i32
    %c0_i32_0 = arith.constant 0 : i32
    %c0_i32_1 = arith.constant 0 : i32
    return %c0_i32, %c0_i32_0 : i32, i32
  }
  func.func @transform_3(%arg0: i32) -> (i32, i32) {
    %c0_i32 = arith.constant 0 : i32
    %c0_i32_0 = arith.constant 0 : i32
    %c0_i32_1 = arith.constant 0 : i32
    return %c0_i32, %c0_i32_0 : i32, i32
  }
  func.func @transform_4(%arg0: i32) -> (i32, i32) {
    %c0_i32 = arith.constant 0 : i32
    %c0_i32_0 = arith.constant 0 : i32
    %c0_i32_1 = arith.constant 0 : i32
    return %c0_i32, %c0_i32_0 : i32, i32
  }
  func.func @transform_5(%arg0: i32) -> (i32, i32) {
    %c0_i32 = arith.constant 0 : i32
    %c0_i32_0 = arith.constant 0 : i32
    %c0_i32_1 = arith.constant 0 : i32
    return %c0_i32, %c0_i32_0 : i32, i32
  }
  func.func @transform_6(%arg0: i32) -> (i32, i32) {
    %c0_i32 = arith.constant 0 : i32
    %c0_i32_0 = arith.constant 0 : i32
    %c0_i32_1 = arith.constant 0 : i32
    return %c0_i32, %c0_i32_0 : i32, i32
  }
  func.func @transform_7(%arg0: i32) -> (i32, i32) {
    %c0_i32 = arith.constant 0 : i32
    %c0_i32_0 = arith.constant 0 : i32
    %c0_i32_1 = arith.constant 0 : i32
    return %c0_i32, %c0_i32_0 : i32, i32
  }
  func.func @transform_8(%arg0: i32) -> (i32, i32) {
    %c0_i32 = arith.constant 0 : i32
    %c0_i32_0 = arith.constant 0 : i32
    %c0_i32_1 = arith.constant 0 : i32
    return %c0_i32, %c0_i32_0 : i32, i32
  }
  func.func @transform_9(%arg0: i32) -> (i32, i32) {
    %c0_i32 = arith.constant 0 : i32
    %c0_i32_0 = arith.constant 0 : i32
    %c0_i32_1 = arith.constant 0 : i32
    return %c0_i32, %c0_i32_0 : i32, i32
  }
  func.func @transform_10(%arg0: i32) -> (i32, i32) {
    %c0_i32 = arith.constant 0 : i32
    %c0_i32_0 = arith.constant 0 : i32
    return %arg0, %c0_i32 : i32, i32
  }
  func.func @transform_11(%arg0: i32) -> (i32, i32) {
    %c0_i32 = arith.constant 0 : i32
    %c0_i32_0 = arith.constant 0 : i32
    return %arg0, %c0_i32 : i32, i32
  }
}

</mosaic_0001>

<llo_original>
// kernel: vae_forward.1
$region0: #{vae_forward.1}
  #allocation0 [shape = 'u32[]', space=smem, size = 0x4, offset = 0x4, fixed_abs, tag = 'smem constant byte address 0x4 - core index']
  #allocation1 [shape = 'u32[144,128]{1,0:T(1,128)}', space=vmem, size = 0x12000, scoped, tag = 'internal scratch']
  %s0 = inlined_call_operand.vmem [shape: bf16[8,1024], index: 0, kind: input, shape index: {}]
  %s1 = inlined_call_operand.vmem [shape: f32[8,8], index: 1, kind: input, shape index: {}]
  %s2 = inlined_call_operand.vmem [shape: bf16[1024,128], index: 2, kind: input, shape index: {}]
  %s3 = inlined_call_operand.vmem [shape: f32[1,128], index: 3, kind: input, shape index: {}]
  %s4 = inlined_call_operand.vmem [shape: bf16[128,16], index: 4, kind: input, shape index: {}]
  %s5 = inlined_call_operand.vmem [shape: f32[1,16], index: 5, kind: input, shape index: {}]
  %s6 = inlined_call_operand.vmem [shape: bf16[8,128], index: 6, kind: input, shape index: {}]
  %s7 = inlined_call_operand.vmem [shape: f32[1,128], index: 7, kind: input, shape index: {}]
  %s8 = inlined_call_operand.vmem [shape: bf16[128,1024], index: 8, kind: input, shape index: {}]
  %s9 = inlined_call_operand.vmem [shape: f32[1,1024], index: 9, kind: input, shape index: {}]
  %s10 = inlined_call_operand.vmem [shape: f32[8,1024], index: 10, kind: output, shape index: {0}]
  %s11 = inlined_call_operand.vmem [shape: f32[8,24], index: 11, kind: output, shape index: {1}]
  %12 = xla_tuple %s10, %s11
  %s13 = sld [smem:[#allocation0]]
  $region58: #{vae_forward.1} parent=0
    _
  %s15 = ssub.s32 1, %s13
  %s16 = scalar_select 0, %s15, %s13
  // Predicated region
  $region2: #{vae_forward.1} parent=0 // pred_check
    _
  $region3: #{vae_forward.1} parent=0 // pred_check_branch
    %18 = sbr.rel (0) target = $region5
  $region4: #{vae_forward.1} parent=0 // pred_region
    _
  $region5: #{vae_forward.1} parent=0 // pred_fallthru
    _
  // Predicated region
  $region6: #{vae_forward.1} parent=0 // pred_check
    _
  $region7: #{vae_forward.1} parent=0 // pred_check_branch
    %20 = sbr.rel (0) target = $region9
  $region8: #{vae_forward.1} parent=0 // pred_region
    _
  $region9: #{vae_forward.1} parent=0 // pred_fallthru
    _
  // Predicated region
  $region10: #{vae_forward.1} parent=0 // pred_check
    _
  $region11: #{vae_forward.1} parent=0 // pred_check_branch
    %22 = sbr.rel (0) target = $region13
  $region12: #{vae_forward.1} parent=0 // pred_region
    _
  $region13: #{vae_forward.1} parent=0 // pred_fallthru
    _
  // Predicated region
  $region14: #{vae_forward.1} parent=0 // pred_check
    _
  $region15: #{vae_forward.1} parent=0 // pred_check_branch
    %24 = sbr.rel (0) target = $region17
  $region16: #{vae_forward.1} parent=0 // pred_region
    _
  $region17: #{vae_forward.1} parent=0 // pred_fallthru
    _
  // Predicated region
  $region18: #{vae_forward.1} parent=0 // pred_check
    _
  $region19: #{vae_forward.1} parent=0 // pred_check_branch
    %26 = sbr.rel (0) target = $region21
  $region20: #{vae_forward.1} parent=0 // pred_region
    _
  $region21: #{vae_forward.1} parent=0 // pred_fallthru
    _
  // Predicated region
  $region22: #{vae_forward.1} parent=0 // pred_check
    _
  $region23: #{vae_forward.1} parent=0 // pred_check_branch
    %28 = sbr.rel (0) target = $region25
  $region24: #{vae_forward.1} parent=0 // pred_region
    _
  $region25: #{vae_forward.1} parent=0 // pred_fallthru
    _
  // Predicated region
  $region26: #{vae_forward.1} parent=0 // pred_check
    _
  $region27: #{vae_forward.1} parent=0 // pred_check_branch
    %30 = sbr.rel (0) target = $region29
  $region28: #{vae_forward.1} parent=0 // pred_region
    _
  $region29: #{vae_forward.1} parent=0 // pred_fallthru
    _
  // Predicated region
  $region30: #{vae_forward.1} parent=0 // pred_check
    _
  $region31: #{vae_forward.1} parent=0 // pred_check_branch
    %32 = sbr.rel (0) target = $region33
  $region32: #{vae_forward.1} parent=0 // pred_region
    _
  $region33: #{vae_forward.1} parent=0 // pred_fallthru
    _
  // Predicated region
  $region34: #{vae_forward.1} parent=0 // pred_check
    _
  $region35: #{vae_forward.1} parent=0 // pred_check_branch
    %34 = sbr.rel (0) target = $region37
  $region36: #{vae_forward.1} parent=0 // pred_region
    _
  $region37: #{vae_forward.1} parent=0 // pred_fallthru
    _
  // Predicated region
  $region38: #{vae_forward.1} parent=0 // pred_check
    _
  $region39: #{vae_forward.1} parent=0 // pred_check_branch
    %36 = sbr.rel (0) target = $region41
  $region40: #{vae_forward.1} parent=0 // pred_region
    _
  $region41: #{vae_forward.1} parent=0 // pred_fallthru
    _
  %v38 = vld [vmem:[%s0] sm:$0xff]
  %v39 = vld [vmem:[%s0 + $0x8] sm:$0xff]
  %v40 = vld [vmem:[%s0 + $0x10] sm:$0xff]
  %v41 = vld [vmem:[%s0 + $0x18] sm:$0xff]
  %v42 = vld [vmem:[%s2] sm:$0xf]
  %v43 = vld [vmem:[%s2 + $0x4] sm:$0xf]
  %v44 = vld [vmem:[%s2 + $0x8] sm:$0xf]
  %v45 = vld [vmem:[%s2 + $0xc] sm:$0xf]
  %v46 = vld [vmem:[%s2 + $0x10] sm:$0xf]
  %v47 = vld [vmem:[%s2 + $0x14] sm:$0xf]
  %v48 = vld [vmem:[%s2 + $0x18] sm:$0xf]
  %v49 = vld [vmem:[%s2 + $0x1c] sm:$0xf]
  %v50 = vld [vmem:[%s2 + $0x20] sm:$0xf]
  %v51 = vld [vmem:[%s2 + $0x24] sm:$0xf]
  %v52 = vld [vmem:[%s2 + $0x28] sm:$0xf]
  %v53 = vld [vmem:[%s2 + $0x2c] sm:$0xf]
  %v54 = vld [vmem:[%s2 + $0x30] sm:$0xf]
  %v55 = vld [vmem:[%s2 + $0x34] sm:$0xf]
  %v56 = vld [vmem:[%s2 + $0x38] sm:$0xf]
  %v57 = vld [vmem:[%s2 + $0x3c] sm:$0xf]
  %v58 = vld [vmem:[%s2 + $0x40] sm:$0xf]
  %v59 = vld [vmem:[%s2 + $0x44] sm:$0xf]
  %v60 = vld [vmem:[%s2 + $0x48] sm:$0xf]
  %v61 = vld [vmem:[%s2 + $0x4c] sm:$0xf]
  %v62 = vld [vmem:[%s2 + $0x50] sm:$0xf]
  %v63 = vld [vmem:[%s2 + $0x54] sm:$0xf]
  %v64 = vld [vmem:[%s2 + $0x58] sm:$0xf]
  %v65 = vld [vmem:[%s2 + $0x5c] sm:$0xf]
  %v66 = vld [vmem:[%s2 + $0x60] sm:$0xf]
  %v67 = vld [vmem:[%s2 + $0x64] sm:$0xf]
  %v68 = vld [vmem:[%s2 + $0x68] sm:$0xf]
  %v69 = vld [vmem:[%s2 + $0x6c] sm:$0xf]
  %v70 = vld [vmem:[%s2 + $0x70] sm:$0xf]
  %v71 = vld [vmem:[%s2 + $0x74] sm:$0xf]
  %v72 = vld [vmem:[%s2 + $0x78] sm:$0xf]
  %v73 = vld [vmem:[%s2 + $0x7c] sm:$0xf]
  %v74 = vld [vmem:[%s2 + $0x80] sm:$0xf]
  %v75 = vld [vmem:[%s2 + $0x84] sm:$0xf]
  %v76 = vld [vmem:[%s2 + $0x88] sm:$0xf]
  %v77 = vld [vmem:[%s2 + $0x8c] sm:$0xf]
  %v78 = vld [vmem:[%s2 + $0x90] sm:$0xf]
  %v79 = vld [vmem:[%s2 + $0x94] sm:$0xf]
  %v80 = vld [vmem:[%s2 + $0x98] sm:$0xf]
  %v81 = vld [vmem:[%s2 + $0x9c] sm:$0xf]
  %v82 = vld [vmem:[%s2 + $0xa0] sm:$0xf]
  %v83 = vld [vmem:[%s2 + $0xa4] sm:$0xf]
  %v84 = vld [vmem:[%s2 + $0xa8] sm:$0xf]
  %v85 = vld [vmem:[%s2 + $0xac] sm:$0xf]
  %v86 = vld [vmem:[%s2 + $0xb0] sm:$0xf]
  %v87 = vld [vmem:[%s2 + $0xb4] sm:$0xf]
  %v88 = vld [vmem:[%s2 + $0xb8] sm:$0xf]
  %v89 = vld [vmem:[%s2 + $0xbc] sm:$0xf]
  %v90 = vld [vmem:[%s2 + $0xc0] sm:$0xf]
  %v91 = vld [vmem:[%s2 + $0xc4] sm:$0xf]
  %v92 = vld [vmem:[%s2 + $0xc8] sm:$0xf]
  %v93 = vld [vmem:[%s2 + $0xcc] sm:$0xf]
  %v94 = vld [vmem:[%s2 + $0xd0] sm:$0xf]
  %v95 = vld [vmem:[%s2 + $0xd4] sm:$0xf]
  %v96 = vld [vmem:[%s2 + $0xd8] sm:$0xf]
  %v97 = vld [vmem:[%s2 + $0xdc] sm:$0xf]
  %v98 = vld [vmem:[%s2 + $0xe0] sm:$0xf]
  %v99 = vld [vmem:[%s2 + $0xe4] sm:$0xf]
  %v100 = vld [vmem:[%s2 + $0xe8] sm:$0xf]
  %v101 = vld [vmem:[%s2 + $0xec] sm:$0xf]
  %v102 = vld [vmem:[%s2 + $0xf0] sm:$0xf]
  %v103 = vld [vmem:[%s2 + $0xf4] sm:$0xf]
  %v104 = vld [vmem:[%s2 + $0xf8] sm:$0xf]
  %v105 = vld [vmem:[%s2 + $0xfc] sm:$0xf]
  %v106 = vld [vmem:[%s2 + $0x100] sm:$0xf]
  %v107 = vld [vmem:[%s2 + $0x104] sm:$0xf]
  %v108 = vld [vmem:[%s2 + $0x108] sm:$0xf]
  %v109 = vld [vmem:[%s2 + $0x10c] sm:$0xf]
  %v110 = vld [vmem:[%s2 + $0x110] sm:$0xf]
  %v111 = vld [vmem:[%s2 + $0x114] sm:$0xf]
  %v112 = vld [vmem:[%s2 + $0x118] sm:$0xf]
  %v113 = vld [vmem:[%s2 + $0x11c] sm:$0xf]
  %v114 = vld [vmem:[%s2 + $0x120] sm:$0xf]
  %v115 = vld [vmem:[%s2 + $0x124] sm:$0xf]
  %v116 = vld [vmem:[%s2 + $0x128] sm:$0xf]
  %v117 = vld [vmem:[%s2 + $0x12c] sm:$0xf]
  %v118 = vld [vmem:[%s2 + $0x130] sm:$0xf]
  %v119 = vld [vmem:[%s2 + $0x134] sm:$0xf]
  %v120 = vld [vmem:[%s2 + $0x138] sm:$0xf]
  %v121 = vld [vmem:[%s2 + $0x13c] sm:$0xf]
  %v122 = vld [vmem:[%s2 + $0x140] sm:$0xf]
  %v123 = vld [vmem:[%s2 + $0x144] sm:$0xf]
  %v124 = vld [vmem:[%s2 + $0x148] sm:$0xf]
  %v125 = vld [vmem:[%s2 + $0x14c] sm:$0xf]
  %v126 = vld [vmem:[%s2 + $0x150] sm:$0xf]
  %v127 = vld [vmem:[%s2 + $0x154] sm:$0xf]
  %v128 = vld [vmem:[%s2 + $0x158] sm:$0xf]
  %v129 = vld [vmem:[%s2 + $0x15c] sm:$0xf]
  %v130 = vld [vmem:[%s2 + $0x160] sm:$0xf]
  %v131 = vld [vmem:[%s2 + $0x164] sm:$0xf]
  %v132 = vld [vmem:[%s2 + $0x168] sm:$0xf]
  %v133 = vld [vmem:[%s2 + $0x16c] sm:$0xf]
  %v134 = vld [vmem:[%s2 + $0x170] sm:$0xf]
  %v135 = vld [vmem:[%s2 + $0x174] sm:$0xf]
  %v136 = vld [vmem:[%s2 + $0x178] sm:$0xf]
  %v137 = vld [vmem:[%s2 + $0x17c] sm:$0xf]
  %v138 = vld [vmem:[%s2 + $0x180] sm:$0xf]
  %v139 = vld [vmem:[%s2 + $0x184] sm:$0xf]
  %v140 = vld [vmem:[%s2 + $0x188] sm:$0xf]
  %v141 = vld [vmem:[%s2 + $0x18c] sm:$0xf]
  %v142 = vld [vmem:[%s2 + $0x190] sm:$0xf]
  %v143 = vld [vmem:[%s2 + $0x194] sm:$0xf]
  %v144 = vld [vmem:[%s2 + $0x198] sm:$0xf]
  %v145 = vld [vmem:[%s2 + $0x19c] sm:$0xf]
  %v146 = vld [vmem:[%s2 + $0x1a0] sm:$0xf]
  %v147 = vld [vmem:[%s2 + $0x1a4] sm:$0xf]
  %v148 = vld [vmem:[%s2 + $0x1a8] sm:$0xf]
  %v149 = vld [vmem:[%s2 + $0x1ac] sm:$0xf]
  %v150 = vld [vmem:[%s2 + $0x1b0] sm:$0xf]
  %v151 = vld [vmem:[%s2 + $0x1b4] sm:$0xf]
  %v152 = vld [vmem:[%s2 + $0x1b8] sm:$0xf]
  %v153 = vld [vmem:[%s2 + $0x1bc] sm:$0xf]
  %v154 = vld [vmem:[%s2 + $0x1c0] sm:$0xf]
  %v155 = vld [vmem:[%s2 + $0x1c4] sm:$0xf]
  %v156 = vld [vmem:[%s2 + $0x1c8] sm:$0xf]
  %v157 = vld [vmem:[%s2 + $0x1cc] sm:$0xf]
  %v158 = vld [vmem:[%s2 + $0x1d0] sm:$0xf]
  %v159 = vld [vmem:[%s2 + $0x1d4] sm:$0xf]
  %v160 = vld [vmem:[%s2 + $0x1d8] sm:$0xf]
  %v161 = vld [vmem:[%s2 + $0x1dc] sm:$0xf]
  %v162 = vld [vmem:[%s2 + $0x1e0] sm:$0xf]
  %v163 = vld [vmem:[%s2 + $0x1e4] sm:$0xf]
  %v164 = vld [vmem:[%s2 + $0x1e8] sm:$0xf]
  %v165 = vld [vmem:[%s2 + $0x1ec] sm:$0xf]
  %v166 = vld [vmem:[%s2 + $0x1f0] sm:$0xf]
  %v167 = vld [vmem:[%s2 + $0x1f4] sm:$0xf]
  %v168 = vld [vmem:[%s2 + $0x1f8] sm:$0xf]
  %v169 = vld [vmem:[%s2 + $0x1fc] sm:$0xf]
  %v170 = vld [vmem:[%s3] sm:$0x1]
  %v172 = vlaneseq
  %v173 = vshrl.u32 %v172, 7
  %v174 = vsub.s32 0, %v173
  %v175 = vrot.slane %v170, %v174
  %v181 = vunpack.c.l.b16 %v38
  %v182 = vunpack.c.h.b16 %v38
  %v183 = vunpack.c.l.b16 %v39
  %v184 = vunpack.c.h.b16 %v39
  %v185 = vunpack.c.l.b16 %v40
  %v186 = vunpack.c.h.b16 %v40
  %v187 = vunpack.c.l.b16 %v41
  %v188 = vunpack.c.h.b16 %v41
  %v189 = vpack.c.b16 %v181, %v181
  %v190 = vpack.c.b16 %v182, %v182
  %v191 = vpack.c.b16 %v183, %v183
  %v192 = vpack.c.b16 %v184, %v184
  %v193 = vpack.c.b16 %v185, %v185
  %v194 = vpack.c.b16 %v186, %v186
  %v195 = vpack.c.b16 %v187, %v187
  %v196 = vpack.c.b16 %v188, %v188
  %v333 = vunpack.c.l.b16 %v42
  %v334 = vunpack.c.l.b16 %v43
  %v335 = vunpack.c.l.b16 %v44
  %v336 = vunpack.c.l.b16 %v45
  %v337 = vunpack.c.l.b16 %v46
  %v338 = vunpack.c.l.b16 %v47
  %v339 = vunpack.c.l.b16 %v48
  %v340 = vunpack.c.l.b16 %v49
  %v341 = vunpack.c.l.b16 %v50
  %v342 = vunpack.c.l.b16 %v51
  %v343 = vunpack.c.l.b16 %v52
  %v344 = vunpack.c.l.b16 %v53
  %v345 = vunpack.c.l.b16 %v54
  %v346 = vunpack.c.l.b16 %v55
  %v347 = vunpack.c.l.b16 %v56
  %v348 = vunpack.c.l.b16 %v57
  %v349 = vunpack.c.l.b16 %v58
  %v350 = vunpack.c.l.b16 %v59
  %v351 = vunpack.c.l.b16 %v60
  %v352 = vunpack.c.l.b16 %v61
  %v353 = vunpack.c.l.b16 %v62
  %v354 = vunpack.c.l.b16 %v63
  %v355 = vunpack.c.l.b16 %v64
  %v356 = vunpack.c.l.b16 %v65
  %v357 = vunpack.c.l.b16 %v66
  %v358 = vunpack.c.l.b16 %v67
  %v359 = vunpack.c.l.b16 %v68
  %v360 = vunpack.c.l.b16 %v69
  %v361 = vunpack.c.l.b16 %v70
  %v362 = vunpack.c.l.b16 %v71
  %v363 = vunpack.c.l.b16 %v72
  %v364 = vunpack.c.l.b16 %v73
  %v365 = vunpack.c.l.b16 %v74
  %v366 = vunpack.c.l.b16 %v75
  %v367 = vunpack.c.l.b16 %v76
  %v368 = vunpack.c.l.b16 %v77
  %v369 = vunpack.c.l.b16 %v78
  %v370 = vunpack.c.l.b16 %v79
  %v371 = vunpack.c.l.b16 %v80
  %v372 = vunpack.c.l.b16 %v81
  %v373 = vunpack.c.l.b16 %v82
  %v374 = vunpack.c.l.b16 %v83
  %v375 = vunpack.c.l.b16 %v84
  %v376 = vunpack.c.l.b16 %v85
  %v377 = vunpack.c.l.b16 %v86
  %v378 = vunpack.c.l.b16 %v87
  %v379 = vunpack.c.l.b16 %v88
  %v380 = vunpack.c.l.b16 %v89
  %v381 = vunpack.c.l.b16 %v90
  %v382 = vunpack.c.l.b16 %v91
  %v383 = vunpack.c.l.b16 %v92
  %v384 = vunpack.c.l.b16 %v93
  %v385 = vunpack.c.l.b16 %v94
  %v386 = vunpack.c.l.b16 %v95
  %v387 = vunpack.c.l.b16 %v96
  %v388 = vunpack.c.l.b16 %v97
  %v389 = vunpack.c.l.b16 %v98
  %v390 = vunpack.c.l.b16 %v99
  %v391 = vunpack.c.l.b16 %v100
  %v392 = vunpack.c.l.b16 %v101
  %v393 = vunpack.c.l.b16 %v102
  %v394 = vunpack.c.l.b16 %v103
  %v395 = vunpack.c.l.b16 %v104
  %v396 = vunpack.c.l.b16 %v105
  %v397 = vunpack.c.l.b16 %v106
  %v398 = vunpack.c.l.b16 %v107
  %v399 = vunpack.c.l.b16 %v108
  %v400 = vunpack.c.l.b16 %v109
  %v401 = vunpack.c.l.b16 %v110
  %v402 = vunpack.c.l.b16 %v111
  %v403 = vunpack.c.l.b16 %v112
  %v404 = vunpack.c.l.b16 %v113
  %v405 = vunpack.c.l.b16 %v114
  %v406 = vunpack.c.l.b16 %v115
  %v407 = vunpack.c.l.b16 %v116
  %v408 = vunpack.c.l.b16 %v117
  %v409 = vunpack.c.l.b16 %v118
  %v410 = vunpack.c.l.b16 %v119
  %v411 = vunpack.c.l.b16 %v120
  %v412 = vunpack.c.l.b16 %v121
  %v413 = vunpack.c.l.b16 %v122
  %v414 = vunpack.c.l.b16 %v123
  %v415 = vunpack.c.l.b16 %v124
  %v416 = vunpack.c.l.b16 %v125
  %v417 = vunpack.c.l.b16 %v126
  %v418 = vunpack.c.l.b16 %v127
  %v419 = vunpack.c.l.b16 %v128
  %v420 = vunpack.c.l.b16 %v129
  %v421 = vunpack.c.l.b16 %v130
  %v422 = vunpack.c.l.b16 %v131
  %v423 = vunpack.c.l.b16 %v132
  %v424 = vunpack.c.l.b16 %v133
  %v425 = vunpack.c.l.b16 %v134
  %v426 = vunpack.c.l.b16 %v135
  %v427 = vunpack.c.l.b16 %v136
  %v428 = vunpack.c.l.b16 %v137
  %v429 = vunpack.c.l.b16 %v138
  %v430 = vunpack.c.l.b16 %v139
  %v431 = vunpack.c.l.b16 %v140
  %v432 = vunpack.c.l.b16 %v141
  %v433 = vunpack.c.l.b16 %v142
  %v434 = vunpack.c.l.b16 %v143
  %v435 = vunpack.c.l.b16 %v144
  %v436 = vunpack.c.l.b16 %v145
  %v437 = vunpack.c.l.b16 %v146
  %v438 = vunpack.c.l.b16 %v147
  %v439 = vunpack.c.l.b16 %v148
  %v440 = vunpack.c.l.b16 %v149
  %v441 = vunpack.c.l.b16 %v150
  %v442 = vunpack.c.l.b16 %v151
  %v443 = vunpack.c.l.b16 %v152
  %v444 = vunpack.c.l.b16 %v153
  %v445 = vunpack.c.l.b16 %v154
  %v446 = vunpack.c.l.b16 %v155
  %v447 = vunpack.c.l.b16 %v156
  %v448 = vunpack.c.l.b16 %v157
  %v449 = vunpack.c.l.b16 %v158
  %v450 = vunpack.c.l.b16 %v159
  %v451 = vunpack.c.l.b16 %v160
  %v452 = vunpack.c.l.b16 %v161
  %v453 = vunpack.c.l.b16 %v162
  %v454 = vunpack.c.l.b16 %v163
  %v455 = vunpack.c.l.b16 %v164
  %v456 = vunpack.c.l.b16 %v165
  %v457 = vunpack.c.l.b16 %v166
  %v458 = vunpack.c.l.b16 %v167
  %v459 = vunpack.c.l.b16 %v168
  %v460 = vunpack.c.l.b16 %v169
  %v461 = vpack.c.b16 %v334, %v333
  %v462 = vpack.c.b16 %v336, %v335
  %v463 = vpack.c.b16 %v338, %v337
  %v464 = vpack.c.b16 %v340, %v339
  %v465 = vpack.c.b16 %v342, %v341
  %v466 = vpack.c.b16 %v344, %v343
  %v467 = vpack.c.b16 %v346, %v345
  %v468 = vpack.c.b16 %v348, %v347
  %v469 = vpack.c.b16 %v350, %v349
  %v470 = vpack.c.b16 %v352, %v351
  %v471 = vpack.c.b16 %v354, %v353
  %v472 = vpack.c.b16 %v356, %v355
  %v473 = vpack.c.b16 %v358, %v357
  %v474 = vpack.c.b16 %v360, %v359
  %v475 = vpack.c.b16 %v362, %v361
  %v476 = vpack.c.b16 %v364, %v363
  %v477 = vpack.c.b16 %v366, %v365
  %v478 = vpack.c.b16 %v368, %v367
  %v479 = vpack.c.b16 %v370, %v369
  %v480 = vpack.c.b16 %v372, %v371
  %v481 = vpack.c.b16 %v374, %v373
  %v482 = vpack.c.b16 %v376, %v375
  %v483 = vpack.c.b16 %v378, %v377
  %v484 = vpack.c.b16 %v380, %v379
  %v485 = vpack.c.b16 %v382, %v381
  %v486 = vpack.c.b16 %v384, %v383
  %v487 = vpack.c.b16 %v386, %v385
  %v488 = vpack.c.b16 %v388, %v387
  %v489 = vpack.c.b16 %v390, %v389
  %v490 = vpack.c.b16 %v392, %v391
  %v491 = vpack.c.b16 %v394, %v393
  %v492 = vpack.c.b16 %v396, %v395
  %v493 = vpack.c.b16 %v398, %v397
  %v494 = vpack.c.b16 %v400, %v399
  %v495 = vpack.c.b16 %v402, %v401
  %v496 = vpack.c.b16 %v404, %v403
  %v497 = vpack.c.b16 %v406, %v405
  %v498 = vpack.c.b16 %v408, %v407
  %v499 = vpack.c.b16 %v410, %v409
  %v500 = vpack.c.b16 %v412, %v411
  %v501 = vpack.c.b16 %v414, %v413
  %v502 = vpack.c.b16 %v416, %v415
  %v503 = vpack.c.b16 %v418, %v417
  %v504 = vpack.c.b16 %v420, %v419
  %v505 = vpack.c.b16 %v422, %v421
  %v506 = vpack.c.b16 %v424, %v423
  %v507 = vpack.c.b16 %v426, %v425
  %v508 = vpack.c.b16 %v428, %v427
  %v509 = vpack.c.b16 %v430, %v429
  %v510 = vpack.c.b16 %v432, %v431
  %v511 = vpack.c.b16 %v434, %v433
  %v512 = vpack.c.b16 %v436, %v435
  %v513 = vpack.c.b16 %v438, %v437
  %v514 = vpack.c.b16 %v440, %v439
  %v515 = vpack.c.b16 %v442, %v441
  %v516 = vpack.c.b16 %v444, %v443
  %v517 = vpack.c.b16 %v446, %v445
  %v518 = vpack.c.b16 %v448, %v447
  %v519 = vpack.c.b16 %v450, %v449
  %v520 = vpack.c.b16 %v452, %v451
  %v521 = vpack.c.b16 %v454, %v453
  %v522 = vpack.c.b16 %v456, %v455
  %v523 = vpack.c.b16 %v458, %v457
  %v524 = vpack.c.b16 %v460, %v459
  %589 = vmatprep.subr.bf16.mxu0 0
  %590 = vmatpush1.bf16.msra.mxu0 %v461
  %591 = vmatprep.subr.bf16.mxu0 0
  %592 = vmatpush1.bf16.msra.mxu0 %v462
  %593 = vmatprep.subr.bf16.mxu0 0
  %594 = vmatpush1.bf16.msra.mxu0 %v463
  %595 = vmatprep.subr.bf16.mxu0 0
  %596 = vmatpush1.bf16.msra.mxu0 %v464
  %597 = vmatprep.subr.bf16.mxu0 0
  %598 = vmatpush1.bf16.msra.mxu0 %v465
  %599 = vmatprep.subr.bf16.mxu0 0
  %600 = vmatpush1.bf16.msra.mxu0 %v466
  %601 = vmatprep.subr.bf16.mxu0 0
  %602 = vmatpush1.bf16.msra.mxu0 %v467
  %603 = vmatprep.subr.bf16.mxu0 0
  %604 = vmatpush1.bf16.msra.mxu0 %v468
  %605 = vmatprep.subr.bf16.mxu0 0
  %606 = vmatpush1.bf16.msra.mxu0 %v469
  %607 = vmatprep.subr.bf16.mxu0 0
  %608 = vmatpush1.bf16.msra.mxu0 %v470
  %609 = vmatprep.subr.bf16.mxu0 0
  %610 = vmatpush1.bf16.msra.mxu0 %v471
  %611 = vmatprep.subr.bf16.mxu0 0
  %612 = vmatpush1.bf16.msra.mxu0 %v472
  %613 = vmatprep.subr.bf16.mxu0 0
  %614 = vmatpush1.bf16.msra.mxu0 %v473
  %615 = vmatprep.subr.bf16.mxu0 0
  %616 = vmatpush1.bf16.msra.mxu0 %v474
  %617 = vmatprep.subr.bf16.mxu0 0
  %618 = vmatpush1.bf16.msra.mxu0 %v475
  %619 = vmatprep.subr.bf16.mxu0 0
  %620 = vmatpush1.bf16.msra.mxu0 %v476
  %621 = vmatprep.mubr.bf16.mxu0 %v190
  %622 = vmatmul.mubr.bf16.gmra.mrb[0].mxu0 %v189
  %v623 = vpop.f32.mrb[0].mxu0
  %v624 = vadd.f32 %v175, %v623
  %v625 = vpop.f32.mrb[0].mxu0
  %v626 = vpop.f32.mrb[0].mxu0
  %v627 = vpop.f32.mrb[0].mxu0
  %628 = vdwg.mxu0
  %629 = vmatprep.subr.bf16.mxu0 0
  %630 = vmatpush1.bf16.msra.mxu0 %v477
  %631 = vmatprep.subr.bf16.mxu0 0
  %632 = vmatpush1.bf16.msra.mxu0 %v478
  %633 = vmatprep.subr.bf16.mxu0 0
  %634 = vmatpush1.bf16.msra.mxu0 %v479
  %635 = vmatprep.subr.bf16.mxu0 0
  %636 = vmatpush1.bf16.msra.mxu0 %v480
  %637 = vmatprep.subr.bf16.mxu0 0
  %638 = vmatpush1.bf16.msra.mxu0 %v481
  %639 = vmatprep.subr.bf16.mxu0 0
  %640 = vmatpush1.bf16.msra.mxu0 %v482
  %641 = vmatprep.subr.bf16.mxu0 0
  %642 = vmatpush1.bf16.msra.mxu0 %v483
  %643 = vmatprep.subr.bf16.mxu0 0
  %644 = vmatpush1.bf16.msra.mxu0 %v484
  %645 = vmatprep.subr.bf16.mxu0 0
  %646 = vmatpush1.bf16.msra.mxu0 %v485
  %647 = vmatprep.subr.bf16.mxu0 0
  %648 = vmatpush1.bf16.msra.mxu0 %v486
  %649 = vmatprep.subr.bf16.mxu0 0
  %650 = vmatpush1.bf16.msra.mxu0 %v487
  %651 = vmatprep.subr.bf16.mxu0 0
  %652 = vmatpush1.bf16.msra.mxu0 %v488
  %653 = vmatprep.subr.bf16.mxu0 0
  %654 = vmatpush1.bf16.msra.mxu0 %v489
  %655 = vmatprep.subr.bf16.mxu0 0
  %656 = vmatpush1.bf16.msra.mxu0 %v490
  %657 = vmatprep.subr.bf16.mxu0 0
  %658 = vmatpush1.bf16.msra.mxu0 %v491
  %659 = vmatprep.subr.bf16.mxu0 0
  %660 = vmatpush1.bf16.msra.mxu0 %v492
  %661 = vmatprep.mubr.bf16.mxu0 %v192
  %662 = vmatmul.mubr.bf16.gmra.mrb[0].mxu0 %v191
  %v663 = vpop.f32.mrb[0].mxu0
  %v664 = vadd.f32 %v624, %v663
  %v665 = vpop.f32.mrb[0].mxu0
  %v666 = vpop.f32.mrb[0].mxu0
  %v667 = vpop.f32.mrb[0].mxu0
  %668 = vdwg.mxu0
  %669 = vmatprep.subr.bf16.mxu0 0
  %670 = vmatpush1.bf16.msra.mxu0 %v493
  %671 = vmatprep.subr.bf16.mxu0 0
  %672 = vmatpush1.bf16.msra.mxu0 %v494
  %673 = vmatprep.subr.bf16.mxu0 0
  %674 = vmatpush1.bf16.msra.mxu0 %v495
  %675 = vmatprep.subr.bf16.mxu0 0
  %676 = vmatpush1.bf16.msra.mxu0 %v496
  %677 = vmatprep.subr.bf16.mxu0 0
  %678 = vmatpush1.bf16.msra.mxu0 %v497
  %679 = vmatprep.subr.bf16.mxu0 0
  %680 = vmatpush1.bf16.msra.mxu0 %v498
  %681 = vmatprep.subr.bf16.mxu0 0
  %682 = vmatpush1.bf16.msra.mxu0 %v499
  %683 = vmatprep.subr.bf16.mxu0 0
  %684 = vmatpush1.bf16.msra.mxu0 %v500
  %685 = vmatprep.subr.bf16.mxu0 0
  %686 = vmatpush1.bf16.msra.mxu0 %v501
  %687 = vmatprep.subr.bf16.mxu0 0
  %688 = vmatpush1.bf16.msra.mxu0 %v502
  %689 = vmatprep.subr.bf16.mxu0 0
  %690 = vmatpush1.bf16.msra.mxu0 %v503
  %691 = vmatprep.subr.bf16.mxu0 0
  %692 = vmatpush1.bf16.msra.mxu0 %v504
  %693 = vmatprep.subr.bf16.mxu0 0
  %694 = vmatpush1.bf16.msra.mxu0 %v505
  %695 = vmatprep.subr.bf16.mxu0 0
  %696 = vmatpush1.bf16.msra.mxu0 %v506
  %697 = vmatprep.subr.bf16.mxu0 0
  %698 = vmatpush1.bf16.msra.mxu0 %v507
  %699 = vmatprep.subr.bf16.mxu0 0
  %700 = vmatpush1.bf16.msra.mxu0 %v508
  %701 = vmatprep.mubr.bf16.mxu0 %v194
  %702 = vmatmul.mubr.bf16.gmra.mrb[0].mxu0 %v193
  %v703 = vpop.f32.mrb[0].mxu0
  %v704 = vadd.f32 %v664, %v703
  %v705 = vpop.f32.mrb[0].mxu0
  %v706 = vpop.f32.mrb[0].mxu0
  %v707 = vpop.f32.mrb[0].mxu0
  %708 = vdwg.mxu0
  %709 = vmatprep.subr.bf16.mxu0 0
  %710 = vmatpush1.bf16.msra.mxu0 %v509
  %711 = vmatprep.subr.bf16.mxu0 0
  %712 = vmatpush1.bf16.msra.mxu0 %v510
  %713 = vmatprep.subr.bf16.mxu0 0
  %714 = vmatpush1.bf16.msra.mxu0 %v511
  %715 = vmatprep.subr.bf16.mxu0 0
  %716 = vmatpush1.bf16.msra.mxu0 %v512
  %717 = vmatprep.subr.bf16.mxu0 0
  %718 = vmatpush1.bf16.msra.mxu0 %v513
  %719 = vmatprep.subr.bf16.mxu0 0
  %720 = vmatpush1.bf16.msra.mxu0 %v514
  %721 = vmatprep.subr.bf16.mxu0 0
  %722 = vmatpush1.bf16.msra.mxu0 %v515
  %723 = vmatprep.subr.bf16.mxu0 0
  %724 = vmatpush1.bf16.msra.mxu0 %v516
  %725 = vmatprep.subr.bf16.mxu0 0
  %726 = vmatpush1.bf16.msra.mxu0 %v517
  %727 = vmatprep.subr.bf16.mxu0 0
  %728 = vmatpush1.bf16.msra.mxu0 %v518
  %729 = vmatprep.subr.bf16.mxu0 0
  %730 = vmatpush1.bf16.msra.mxu0 %v519
  %731 = vmatprep.subr.bf16.mxu0 0
  %732 = vmatpush1.bf16.msra.mxu0 %v520
  %733 = vmatprep.subr.bf16.mxu0 0
  %734 = vmatpush1.bf16.msra.mxu0 %v521
  %735 = vmatprep.subr.bf16.mxu0 0
  %736 = vmatpush1.bf16.msra.mxu0 %v522
  %737 = vmatprep.subr.bf16.mxu0 0
  %738 = vmatpush1.bf16.msra.mxu0 %v523
  %739 = vmatprep.subr.bf16.mxu0 0
  %740 = vmatpush1.bf16.msra.mxu0 %v524
  %741 = vmatprep.mubr.bf16.mxu0 %v196
  %742 = vmatmul.mubr.bf16.gmra.mrb[0].mxu0 %v195
  %v743 = vpop.f32.mrb[0].mxu0
  %v744 = vadd.f32 %v704, %v743
  %v745 = vpop.f32.mrb[0].mxu0
  %v746 = vpop.f32.mrb[0].mxu0
  %v747 = vpop.f32.mrb[0].mxu0
  %748 = vdwg.mxu0
  %v749 = vmax.f32 %v744, 0.0
  %v750 = vpack.c.bf16 %v749, %v749
  %v751 = vld [vmem:[%s4] sm:$0xf]
  %v752 = vld [vmem:[%s4 + $0x4] sm:$0xf]
  %v753 = vld [vmem:[%s4 + $0x8] sm:$0xf]
  %v754 = vld [vmem:[%s4 + $0xc] sm:$0xf]
  %v755 = vld [vmem:[%s4 + $0x10] sm:$0xf]
  %v756 = vld [vmem:[%s4 + $0x14] sm:$0xf]
  %v757 = vld [vmem:[%s4 + $0x18] sm:$0xf]
  %v758 = vld [vmem:[%s4 + $0x1c] sm:$0xf]
  %v759 = vld [vmem:[%s4 + $0x20] sm:$0xf]
  %v760 = vld [vmem:[%s4 + $0x24] sm:$0xf]
  %v761 = vld [vmem:[%s4 + $0x28] sm:$0xf]
  %v762 = vld [vmem:[%s4 + $0x2c] sm:$0xf]
  %v763 = vld [vmem:[%s4 + $0x30] sm:$0xf]
  %v764 = vld [vmem:[%s4 + $0x34] sm:$0xf]
  %v765 = vld [vmem:[%s4 + $0x38] sm:$0xf]
  %v766 = vld [vmem:[%s4 + $0x3c] sm:$0xf]
  %v767 = vld [vmem:[%s5] sm:$0x1]
  %v769 = vlaneseq
  %v770 = vshrl.u32 %v769, 7
  %v771 = vsub.s32 0, %v770
  %v772 = vrot.slane %v767, %v771
  %v790 = vunpack.c.l.b16 %v751
  %v791 = vunpack.c.l.b16 %v752
  %v792 = vunpack.c.l.b16 %v753
  %v793 = vunpack.c.l.b16 %v754
  %v794 = vunpack.c.l.b16 %v755
  %v795 = vunpack.c.l.b16 %v756
  %v796 = vunpack.c.l.b16 %v757
  %v797 = vunpack.c.l.b16 %v758
  %v798 = vunpack.c.l.b16 %v759
  %v799 = vunpack.c.l.b16 %v760
  %v800 = vunpack.c.l.b16 %v761
  %v801 = vunpack.c.l.b16 %v762
  %v802 = vunpack.c.l.b16 %v763
  %v803 = vunpack.c.l.b16 %v764
  %v804 = vunpack.c.l.b16 %v765
  %v805 = vunpack.c.l.b16 %v766
  %v806 = vpack.c.b16 %v791, %v790
  %v807 = vpack.c.b16 %v793, %v792
  %v808 = vpack.c.b16 %v795, %v794
  %v809 = vpack.c.b16 %v797, %v796
  %v810 = vpack.c.b16 %v799, %v798
  %v811 = vpack.c.b16 %v801, %v800
  %v812 = vpack.c.b16 %v803, %v802
  %v813 = vpack.c.b16 %v805, %v804
  %822 = vmatprep.subr.bf16.mxu0 0
  %823 = vmatpush1.bf16.msra.mxu0 %v806
  %824 = vmatprep.subr.bf16.mxu0 0
  %825 = vmatpush1.bf16.msra.mxu0 %v807
  %826 = vmatprep.subr.bf16.mxu0 0
  %827 = vmatpush1.bf16.msra.mxu0 %v808
  %828 = vmatprep.subr.bf16.mxu0 0
  %829 = vmatpush1.bf16.msra.mxu0 %v809
  %830 = vmatprep.subr.bf16.mxu0 0
  %831 = vmatpush1.bf16.msra.mxu0 %v810
  %832 = vmatprep.subr.bf16.mxu0 0
  %833 = vmatpush1.bf16.msra.mxu0 %v811
  %834 = vmatprep.subr.bf16.mxu0 0
  %835 = vmatpush1.bf16.msra.mxu0 %v812
  %836 = vmatprep.subr.bf16.mxu0 0
  %837 = vmatpush1.bf16.msra.mxu0 %v813
  %838 = vmatprep.subr.bf16.mxu0 0
  %839 = vmatpush1.bf16.msra.mxu0 0
  %840 = vmatprep.subr.bf16.mxu0 0
  %841 = vmatpush1.bf16.msra.mxu0 0
  %842 = vmatprep.subr.bf16.mxu0 0
  %843 = vmatpush1.bf16.msra.mxu0 0
  %844 = vmatprep.subr.bf16.mxu0 0
  %845 = vmatpush1.bf16.msra.mxu0 0
  %846 = vmatprep.subr.bf16.mxu0 0
  %847 = vmatpush1.bf16.msra.mxu0 0
  %848 = vmatprep.subr.bf16.mxu0 0
  %849 = vmatpush1.bf16.msra.mxu0 0
  %850 = vmatprep.subr.bf16.mxu0 0
  %851 = vmatpush1.bf16.msra.mxu0 0
  %852 = vmatprep.subr.bf16.mxu0 0
  %853 = vmatpush1.bf16.msra.mxu0 0
  %854 = vmatprep.mubr.bf16.mxu0 0
  %855 = vmatmul.mubr.bf16.gmra.mrb[0].mxu0 %v750
  %v856 = vpop.f32.mrb[0].mxu0
  %v857 = vadd.f32 %v772, %v856
  %v858 = vpop.f32.mrb[0].mxu0
  %v859 = vpop.f32.mrb[0].mxu0
  %v860 = vpop.f32.mrb[0].mxu0
  %861 = vdwg.mxu0
  %v862 = vmul.f32 %v857, 0.5
  %v863 = vmul.f32 %v862, 1.442695
  %v864 = vpow.pop %v863
  %v865 = vld [vmem:[%s1] sm:$0xff]
  %867 = vrot.lane.b32.xlu0 %v864, 120
  %v868 = vpop.permute.xlu0 %867
  %v870 = vmul.f32 %v865, %v868
  %v871 = vadd.f32 %v857, %v870
  %v872 = vpack.c.bf16 %v871, %v871
  %v873 = vld [vmem:[%s6] sm:$0xf]
  %v874 = vld [vmem:[%s7] sm:$0x1]
  %v876 = vlaneseq
  %v877 = vshrl.u32 %v876, 7
  %v878 = vsub.s32 0, %v877
  %v879 = vrot.slane %v874, %v878
  %vm881 = vcmask 64512
  %v883 = vsel %vm881, %v872, 0
  %vm885 = vcmask 1043456
  %v887 = vsel %vm885, %v873, 0
  %889 = vmatprep.subr.bf16.mxu0 0
  %890 = vmatpush1.bf16.msra.mxu0 %v887
  %891 = vmatprep.subr.bf16.mxu0 0
  %892 = vmatpush1.bf16.msra.mxu0 0
  %893 = vmatprep.subr.bf16.mxu0 0
  %894 = vmatpush1.bf16.msra.mxu0 0
  %895 = vmatprep.subr.bf16.mxu0 0
  %896 = vmatpush1.bf16.msra.mxu0 0
  %897 = vmatprep.subr.bf16.mxu0 0
  %898 = vmatpush1.bf16.msra.mxu0 0
  %899 = vmatprep.subr.bf16.mxu0 0
  %900 = vmatpush1.bf16.msra.mxu0 0
  %901 = vmatprep.subr.bf16.mxu0 0
  %902 = vmatpush1.bf16.msra.mxu0 0
  %903 = vmatprep.subr.bf16.mxu0 0
  %904 = vmatpush1.bf16.msra.mxu0 0
  %905 = vmatprep.subr.bf16.mxu0 0
  %906 = vmatpush1.bf16.msra.mxu0 0
  %907 = vmatprep.subr.bf16.mxu0 0
  %908 = vmatpush1.bf16.msra.mxu0 0
  %909 = vmatprep.subr.bf16.mxu0 0
  %910 = vmatpush1.bf16.msra.mxu0 0
  %911 = vmatprep.subr.bf16.mxu0 0
  %912 = vmatpush1.bf16.msra.mxu0 0
  %913 = vmatprep.subr.bf16.mxu0 0
  %914 = vmatpush1.bf16.msra.mxu0 0
  %915 = vmatprep.subr.bf16.mxu0 0
  %916 = vmatpush1.bf16.msra.mxu0 0
  %917 = vmatprep.subr.bf16.mxu0 0
  %918 = vmatpush1.bf16.msra.mxu0 0
  %919 = vmatprep.subr.bf16.mxu0 0
  %920 = vmatpush1.bf16.msra.mxu0 0
  %921 = vmatprep.mubr.bf16.mxu0 0
  %922 = vmatmul.mubr.bf16.gmra.mrb[0].mxu0 %v883
  %v923 = vpop.f32.mrb[0].mxu0
  %v924 = vadd.f32 %v879, %v923
  %v925 = vpop.f32.mrb[0].mxu0
  %v926 = vpop.f32.mrb[0].mxu0
  %v927 = vpop.f32.mrb[0].mxu0
  %928 = vdwg.mxu0
  %v929 = vmax.f32 %v924, 0.0
  %v930 = vpack.c.bf16 %v929, %v929
  %v931 = vld [vmem:[%s8] sm:$0xff]
  %v932 = vld [vmem:[%s8 + $0x8] sm:$0xff]
  %v933 = vld [vmem:[%s8 + $0x10] sm:$0xff]
  %v934 = vld [vmem:[%s8 + $0x18] sm:$0xff]
  %v935 = vld [vmem:[%s8 + $0x20] sm:$0xff]
  %v936 = vld [vmem:[%s8 + $0x28] sm:$0xff]
  %v937 = vld [vmem:[%s8 + $0x30] sm:$0xff]
  %v938 = vld [vmem:[%s8 + $0x38] sm:$0xff]
  %v939 = vld [vmem:[%s8 + $0x40] sm:$0xff]
  %v940 = vld [vmem:[%s8 + $0x48] sm:$0xff]
  %v941 = vld [vmem:[%s8 + $0x50] sm:$0xff]
  %v942 = vld [vmem:[%s8 + $0x58] sm:$0xff]
  %v943 = vld [vmem:[%s8 + $0x60] sm:$0xff]
  %v944 = vld [vmem:[%s8 + $0x68] sm:$0xff]
  %v945 = vld [vmem:[%s8 + $0x70] sm:$0xff]
  %v946 = vld [vmem:[%s8 + $0x78] sm:$0xff]
  %v947 = vld [vmem:[%s8 + $0x80] sm:$0xff]
  %v948 = vld [vmem:[%s8 + $0x88] sm:$0xff]
  %v949 = vld [vmem:[%s8 + $0x90] sm:$0xff]
  %v950 = vld [vmem:[%s8 + $0x98] sm:$0xff]
  %v951 = vld [vmem:[%s8 + $0xa0] sm:$0xff]
  %v952 = vld [vmem:[%s8 + $0xa8] sm:$0xff]
  %v953 = vld [vmem:[%s8 + $0xb0] sm:$0xff]
  %v954 = vld [vmem:[%s8 + $0xb8] sm:$0xff]
  %v955 = vld [vmem:[%s8 + $0xc0] sm:$0xff]
  %v956 = vld [vmem:[%s8 + $0xc8] sm:$0xff]
  %v957 = vld [vmem:[%s8 + $0xd0] sm:$0xff]
  %v958 = vld [vmem:[%s8 + $0xd8] sm:$0xff]
  %v959 = vld [vmem:[%s8 + $0xe0] sm:$0xff]
  %v960 = vld [vmem:[%s8 + $0xe8] sm:$0xff]
  %v961 = vld [vmem:[%s8 + $0xf0] sm:$0xff]
  %v962 = vld [vmem:[%s8 + $0xf8] sm:$0xff]
  %v963 = vld [vmem:[%s8 + $0x100] sm:$0xff]
  %v964 = vld [vmem:[%s8 + $0x108] sm:$0xff]
  %v965 = vld [vmem:[%s8 + $0x110] sm:$0xff]
  %v966 = vld [vmem:[%s8 + $0x118] sm:$0xff]
  %v967 = vld [vmem:[%s8 + $0x120] sm:$0xff]
  %v968 = vld [vmem:[%s8 + $0x128] sm:$0xff]
  %v969 = vld [vmem:[%s8 + $0x130] sm:$0xff]
  %v970 = vld [vmem:[%s8 + $0x138] sm:$0xff]
  %v971 = vld [vmem:[%s8 + $0x140] sm:$0xff]
  %v972 = vld [vmem:[%s8 + $0x148] sm:$0xff]
  %v973 = vld [vmem:[%s8 + $0x150] sm:$0xff]
  %v974 = vld [vmem:[%s8 + $0x158] sm:$0xff]
  %v975 = vld [vmem:[%s8 + $0x160] sm:$0xff]
  %v976 = vld [vmem:[%s8 + $0x168] sm:$0xff]
  %v977 = vld [vmem:[%s8 + $0x170] sm:$0xff]
  %v978 = vld [vmem:[%s8 + $0x178] sm:$0xff]
  %v979 = vld [vmem:[%s8 + $0x180] sm:$0xff]
  %v980 = vld [vmem:[%s8 + $0x188] sm:$0xff]
  %v981 = vld [vmem:[%s8 + $0x190] sm:$0xff]
  %v982 = vld [vmem:[%s8 + $0x198] sm:$0xff]
  %v983 = vld [vmem:[%s8 + $0x1a0] sm:$0xff]
  %v984 = vld [vmem:[%s8 + $0x1a8] sm:$0xff]
  %v985 = vld [vmem:[%s8 + $0x1b0] sm:$0xff]
  %v986 = vld [vmem:[%s8 + $0x1b8] sm:$0xff]
  %v987 = vld [vmem:[%s8 + $0x1c0] sm:$0xff]
  %v988 = vld [vmem:[%s8 + $0x1c8] sm:$0xff]
  %v989 = vld [vmem:[%s8 + $0x1d0] sm:$0xff]
  %v990 = vld [vmem:[%s8 + $0x1d8] sm:$0xff]
  %v991 = vld [vmem:[%s8 + $0x1e0] sm:$0xff]
  %v992 = vld [vmem:[%s8 + $0x1e8] sm:$0xff]
  %v993 = vld [vmem:[%s8 + $0x1f0] sm:$0xff]
  %v994 = vld [vmem:[%s8 + $0x1f8] sm:$0xff]
  %v995 = vld [vmem:[%s9] sm:$0xff]
  %v997 = vlaneseq
  %v998 = vshrl.u32 %v997, 7
  %v999 = vsub.s32 0, %v998
  %v1000 = vrot.slane %v995, %v999
  %v1001 = vlaneseq
  %v1002 = vshrl.u32 %v1001, 7
  %v1003 = vsub.s32 1, %v1002
  %v1004 = vrot.slane %v995, %v1003
  %v1005 = vlaneseq
  %v1006 = vshrl.u32 %v1005, 7
  %v1007 = vsub.s32 2, %v1006
  %v1008 = vrot.slane %v995, %v1007
  %v1009 = vlaneseq
  %v1010 = vshrl.u32 %v1009, 7
  %v1011 = vsub.s32 3, %v1010
  %v1012 = vrot.slane %v995, %v1011
  %v1013 = vlaneseq
  %v1014 = vshrl.u32 %v1013, 7
  %v1015 = vsub.s32 4, %v1014
  %v1016 = vrot.slane %v995, %v1015
  %v1017 = vlaneseq
  %v1018 = vshrl.u32 %v1017, 7
  %v1019 = vsub.s32 5, %v1018
  %v1020 = vrot.slane %v995, %v1019
  %v1021 = vlaneseq
  %v1022 = vshrl.u32 %v1021, 7
  %v1023 = vsub.s32 6, %v1022
  %v1024 = vrot.slane %v995, %v1023
  %v1025 = vlaneseq
  %v1026 = vshrl.u32 %v1025, 7
  %v1027 = vsub.s32 7, %v1026
  %v1028 = vrot.slane %v995, %v1027
  %v1101 = vunpack.c.l.b16 %v931
  %v1102 = vunpack.c.h.b16 %v931
  %v1103 = vunpack.c.l.b16 %v932
  %v1104 = vunpack.c.h.b16 %v932
  %v1105 = vunpack.c.l.b16 %v933
  %v1106 = vunpack.c.h.b16 %v933
  %v1107 = vunpack.c.l.b16 %v934
  %v1108 = vunpack.c.h.b16 %v934
  %v1109 = vunpack.c.l.b16 %v935
  %v1110 = vunpack.c.h.b16 %v935
  %v1111 = vunpack.c.l.b16 %v936
  %v1112 = vunpack.c.h.b16 %v936
  %v1113 = vunpack.c.l.b16 %v937
  %v1114 = vunpack.c.h.b16 %v937
  %v1115 = vunpack.c.l.b16 %v938
  %v1116 = vunpack.c.h.b16 %v938
  %v1117 = vunpack.c.l.b16 %v939
  %v1118 = vunpack.c.h.b16 %v939
  %v1119 = vunpack.c.l.b16 %v940
  %v1120 = vunpack.c.h.b16 %v940
  %v1121 = vunpack.c.l.b16 %v941
  %v1122 = vunpack.c.h.b16 %v941
  %v1123 = vunpack.c.l.b16 %v942
  %v1124 = vunpack.c.h.b16 %v942
  %v1125 = vunpack.c.l.b16 %v943
  %v1126 = vunpack.c.h.b16 %v943
  %v1127 = vunpack.c.l.b16 %v944
  %v1128 = vunpack.c.h.b16 %v944
  %v1129 = vunpack.c.l.b16 %v945
  %v1130 = vunpack.c.h.b16 %v945
  %v1131 = vunpack.c.l.b16 %v946
  %v1132 = vunpack.c.h.b16 %v946
  %v1133 = vunpack.c.l.b16 %v947
  %v1134 = vunpack.c.h.b16 %v947
  %v1135 = vunpack.c.l.b16 %v948
  %v1136 = vunpack.c.h.b16 %v948
  %v1137 = vunpack.c.l.b16 %v949
  %v1138 = vunpack.c.h.b16 %v949
  %v1139 = vunpack.c.l.b16 %v950
  %v1140 = vunpack.c.h.b16 %v950
  %v1141 = vunpack.c.l.b16 %v951
  %v1142 = vunpack.c.h.b16 %v951
  %v1143 = vunpack.c.l.b16 %v952
  %v1144 = vunpack.c.h.b16 %v952
  %v1145 = vunpack.c.l.b16 %v953
  %v1146 = vunpack.c.h.b16 %v953
  %v1147 = vunpack.c.l.b16 %v954
  %v1148 = vunpack.c.h.b16 %v954
  %v1149 = vunpack.c.l.b16 %v955
  %v1150 = vunpack.c.h.b16 %v955
  %v1151 = vunpack.c.l.b16 %v956
  %v1152 = vunpack.c.h.b16 %v956
  %v1153 = vunpack.c.l.b16 %v957
  %v1154 = vunpack.c.h.b16 %v957
  %v1155 = vunpack.c.l.b16 %v958
  %v1156 = vunpack.c.h.b16 %v958
  %v1157 = vunpack.c.l.b16 %v959
  %v1158 = vunpack.c.h.b16 %v959
  %v1159 = vunpack.c.l.b16 %v960
  %v1160 = vunpack.c.h.b16 %v960
  %v1161 = vunpack.c.l.b16 %v961
  %v1162 = vunpack.c.h.b16 %v961
  %v1163 = vunpack.c.l.b16 %v962
  %v1164 = vunpack.c.h.b16 %v962
  %v1165 = vunpack.c.l.b16 %v963
  %v1166 = vunpack.c.h.b16 %v963
  %v1167 = vunpack.c.l.b16 %v964
  %v1168 = vunpack.c.h.b16 %v964
  %v1169 = vunpack.c.l.b16 %v965
  %v1170 = vunpack.c.h.b16 %v965
  %v1171 = vunpack.c.l.b16 %v966
  %v1172 = vunpack.c.h.b16 %v966
  %v1173 = vunpack.c.l.b16 %v967
  %v1174 = vunpack.c.h.b16 %v967
  %v1175 = vunpack.c.l.b16 %v968
  %v1176 = vunpack.c.h.b16 %v968
  %v1177 = vunpack.c.l.b16 %v969
  %v1178 = vunpack.c.h.b16 %v969
  %v1179 = vunpack.c.l.b16 %v970
  %v1180 = vunpack.c.h.b16 %v970
  %v1181 = vunpack.c.l.b16 %v971
  %v1182 = vunpack.c.h.b16 %v971
  %v1183 = vunpack.c.l.b16 %v972
  %v1184 = vunpack.c.h.b16 %v972
  %v1185 = vunpack.c.l.b16 %v973
  %v1186 = vunpack.c.h.b16 %v973
  %v1187 = vunpack.c.l.b16 %v974
  %v1188 = vunpack.c.h.b16 %v974
  %v1189 = vunpack.c.l.b16 %v975
  %v1190 = vunpack.c.h.b16 %v975
  %v1191 = vunpack.c.l.b16 %v976
  %v1192 = vunpack.c.h.b16 %v976
  %v1193 = vunpack.c.l.b16 %v977
  %v1194 = vunpack.c.h.b16 %v977
  %v1195 = vunpack.c.l.b16 %v978
  %v1196 = vunpack.c.h.b16 %v978
  %v1197 = vunpack.c.l.b16 %v979
  %v1198 = vunpack.c.h.b16 %v979
  %v1199 = vunpack.c.l.b16 %v980
  %v1200 = vunpack.c.h.b16 %v980
  %v1201 = vunpack.c.l.b16 %v981
  %v1202 = vunpack.c.h.b16 %v981
  %v1203 = vunpack.c.l.b16 %v982
  %v1204 = vunpack.c.h.b16 %v982
  %v1205 = vunpack.c.l.b16 %v983
  %v1206 = vunpack.c.h.b16 %v983
  %v1207 = vunpack.c.l.b16 %v984
  %v1208 = vunpack.c.h.b16 %v984
  %v1209 = vunpack.c.l.b16 %v985
  %v1210 = vunpack.c.h.b16 %v985
  %v1211 = vunpack.c.l.b16 %v986
  %v1212 = vunpack.c.h.b16 %v986
  %v1213 = vunpack.c.l.b16 %v987
  %v1214 = vunpack.c.h.b16 %v987
  %v1215 = vunpack.c.l.b16 %v988
  %v1216 = vunpack.c.h.b16 %v988
  %v1217 = vunpack.c.l.b16 %v989
  %v1218 = vunpack.c.h.b16 %v989
  %v1219 = vunpack.c.l.b16 %v990
  %v1220 = vunpack.c.h.b16 %v990
  %v1221 = vunpack.c.l.b16 %v991
  %v1222 = vunpack.c.h.b16 %v991
  %v1223 = vunpack.c.l.b16 %v992
  %v1224 = vunpack.c.h.b16 %v992
  %v1225 = vunpack.c.l.b16 %v993
  %v1226 = vunpack.c.h.b16 %v993
  %v1227 = vunpack.c.l.b16 %v994
  %v1228 = vunpack.c.h.b16 %v994
  %v1229 = vpack.c.b16 %v1109, %v1101
  %v1230 = vpack.c.b16 %v1110, %v1102
  %v1231 = vpack.c.b16 %v1111, %v1103
  %v1232 = vpack.c.b16 %v1112, %v1104
  %v1233 = vpack.c.b16 %v1113, %v1105
  %v1234 = vpack.c.b16 %v1114, %v1106
  %v1235 = vpack.c.b16 %v1115, %v1107
  %v1236 = vpack.c.b16 %v1116, %v1108
  %v1237 = vpack.c.b16 %v1125, %v1117
  %v1238 = vpack.c.b16 %v1126, %v1118
  %v1239 = vpack.c.b16 %v1127, %v1119
  %v1240 = vpack.c.b16 %v1128, %v1120
  %v1241 = vpack.c.b16 %v1129, %v1121
  %v1242 = vpack.c.b16 %v1130, %v1122
  %v1243 = vpack.c.b16 %v1131, %v1123
  %v1244 = vpack.c.b16 %v1132, %v1124
  %v1245 = vpack.c.b16 %v1141, %v1133
  %v1246 = vpack.c.b16 %v1142, %v1134
  %v1247 = vpack.c.b16 %v1143, %v1135
  %v1248 = vpack.c.b16 %v1144, %v1136
  %v1249 = vpack.c.b16 %v1145, %v1137
  %v1250 = vpack.c.b16 %v1146, %v1138
  %v1251 = vpack.c.b16 %v1147, %v1139
  %v1252 = vpack.c.b16 %v1148, %v1140
  %v1253 = vpack.c.b16 %v1157, %v1149
  %v1254 = vpack.c.b16 %v1158, %v1150
  %v1255 = vpack.c.b16 %v1159, %v1151
  %v1256 = vpack.c.b16 %v1160, %v1152
  %v1257 = vpack.c.b16 %v1161, %v1153
  %v1258 = vpack.c.b16 %v1162, %v1154
  %v1259 = vpack.c.b16 %v1163, %v1155
  %v1260 = vpack.c.b16 %v1164, %v1156
  %v1261 = vpack.c.b16 %v1173, %v1165
  %v1262 = vpack.c.b16 %v1174, %v1166
  %v1263 = vpack.c.b16 %v1175, %v1167
  %v1264 = vpack.c.b16 %v1176, %v1168
  %v1265 = vpack.c.b16 %v1177, %v1169
  %v1266 = vpack.c.b16 %v1178, %v1170
  %v1267 = vpack.c.b16 %v1179, %v1171
  %v1268 = vpack.c.b16 %v1180, %v1172
  %v1269 = vpack.c.b16 %v1189, %v1181
  %v1270 = vpack.c.b16 %v1190, %v1182
  %v1271 = vpack.c.b16 %v1191, %v1183
  %v1272 = vpack.c.b16 %v1192, %v1184
  %v1273 = vpack.c.b16 %v1193, %v1185
  %v1274 = vpack.c.b16 %v1194, %v1186
  %v1275 = vpack.c.b16 %v1195, %v1187
  %v1276 = vpack.c.b16 %v1196, %v1188
  %v1277 = vpack.c.b16 %v1205, %v1197
  %v1278 = vpack.c.b16 %v1206, %v1198
  %v1279 = vpack.c.b16 %v1207, %v1199
  %v1280 = vpack.c.b16 %v1208, %v1200
  %v1281 = vpack.c.b16 %v1209, %v1201
  %v1282 = vpack.c.b16 %v1210, %v1202
  %v1283 = vpack.c.b16 %v1211, %v1203
  %v1284 = vpack.c.b16 %v1212, %v1204
  %v1285 = vpack.c.b16 %v1221, %v1213
  %v1286 = vpack.c.b16 %v1222, %v1214
  %v1287 = vpack.c.b16 %v1223, %v1215
  %v1288 = vpack.c.b16 %v1224, %v1216
  %v1289 = vpack.c.b16 %v1225, %v1217
  %v1290 = vpack.c.b16 %v1226, %v1218
  %v1291 = vpack.c.b16 %v1227, %v1219
  %v1292 = vpack.c.b16 %v1228, %v1220
  %1357 = vmatprep.subr.bf16.mxu0 %v1230
  %1358 = vmatpush1.bf16.msra.mxu0 %v1229
  %1359 = vmatprep.subr.bf16.mxu0 %v1238
  %1360 = vmatpush1.bf16.msra.mxu0 %v1237
  %1361 = vmatprep.subr.bf16.mxu0 %v1246
  %1362 = vmatpush1.bf16.msra.mxu0 %v1245
  %1363 = vmatprep.subr.bf16.mxu0 %v1254
  %1364 = vmatpush1.bf16.msra.mxu0 %v1253
  %1365 = vmatprep.subr.bf16.mxu0 %v1262
  %1366 = vmatpush1.bf16.msra.mxu0 %v1261
  %1367 = vmatprep.subr.bf16.mxu0 %v1270
  %1368 = vmatpush1.bf16.msra.mxu0 %v1269
  %1369 = vmatprep.subr.bf16.mxu0 %v1278
  %1370 = vmatpush1.bf16.msra.mxu0 %v1277
  %1371 = vmatprep.subr.bf16.mxu0 %v1286
  %1372 = vmatpush1.bf16.msra.mxu0 %v1285
  %1373 = vmatprep.subr.bf16.mxu0 0
  %1374 = vmatpush1.bf16.msra.mxu0 0
  %1375 = vmatprep.subr.bf16.mxu0 0
  %1376 = vmatpush1.bf16.msra.mxu0 0
  %1377 = vmatprep.subr.bf16.mxu0 0
  %1378 = vmatpush1.bf16.msra.mxu0 0
  %1379 = vmatprep.subr.bf16.mxu0 0
  %1380 = vmatpush1.bf16.msra.mxu0 0
  %1381 = vmatprep.subr.bf16.mxu0 0
  %1382 = vmatpush1.bf16.msra.mxu0 0
  %1383 = vmatprep.subr.bf16.mxu0 0
  %1384 = vmatpush1.bf16.msra.mxu0 0
  %1385 = vmatprep.subr.bf16.mxu0 0
  %1386 = vmatpush1.bf16.msra.mxu0 0
  %1387 = vmatprep.subr.bf16.mxu0 0
  %1388 = vmatpush1.bf16.msra.mxu0 0
  %1389 = vmatprep.mubr.bf16.mxu0 0
  %1390 = vmatmul.mubr.bf16.gmra.mrb[0].mxu0 %v930
  %v1391 = vpop.f32.mrb[0].mxu0
  %v1392 = vadd.f32 %v1000, %v1391
  %v1393 = vpop.f32.mrb[0].mxu0
  %v1394 = vadd.f32 %v1004, %v1393
  %v1395 = vpop.f32.mrb[0].mxu0
  %v1396 = vpop.f32.mrb[0].mxu0
  %1397 = vdwg.mxu0
  %1398 = vmatprep.subr.bf16.mxu0 %v1232
  %1399 = vmatpush1.bf16.msra.mxu0 %v1231
  %1400 = vmatprep.subr.bf16.mxu0 %v1240
  %1401 = vmatpush1.bf16.msra.mxu0 %v1239
  %1402 = vmatprep.subr.bf16.mxu0 %v1248
  %1403 = vmatpush1.bf16.msra.mxu0 %v1247
  %1404 = vmatprep.subr.bf16.mxu0 %v1256
  %1405 = vmatpush1.bf16.msra.mxu0 %v1255
  %1406 = vmatprep.subr.bf16.mxu0 %v1264
  %1407 = vmatpush1.bf16.msra.mxu0 %v1263
  %1408 = vmatprep.subr.bf16.mxu0 %v1272
  %1409 = vmatpush1.bf16.msra.mxu0 %v1271
  %1410 = vmatprep.subr.bf16.mxu0 %v1280
  %1411 = vmatpush1.bf16.msra.mxu0 %v1279
  %1412 = vmatprep.subr.bf16.mxu0 %v1288
  %1413 = vmatpush1.bf16.msra.mxu0 %v1287
  %1414 = vmatprep.subr.bf16.mxu0 0
  %1415 = vmatpush1.bf16.msra.mxu0 0
  %1416 = vmatprep.subr.bf16.mxu0 0
  %1417 = vmatpush1.bf16.msra.mxu0 0
  %1418 = vmatprep.subr.bf16.mxu0 0
  %1419 = vmatpush1.bf16.msra.mxu0 0
  %1420 = vmatprep.subr.bf16.mxu0 0
  %1421 = vmatpush1.bf16.msra.mxu0 0
  %1422 = vmatprep.subr.bf16.mxu0 0
  %1423 = vmatpush1.bf16.msra.mxu0 0
  %1424 = vmatprep.subr.bf16.mxu0 0
  %1425 = vmatpush1.bf16.msra.mxu0 0
  %1426 = vmatprep.subr.bf16.mxu0 0
  %1427 = vmatpush1.bf16.msra.mxu0 0
  %1428 = vmatprep.subr.bf16.mxu0 0
  %1429 = vmatpush1.bf16.msra.mxu0 0
  %1430 = vmatprep.mubr.bf16.mxu0 0
  %1431 = vmatmul.mubr.bf16.gmra.mrb[0].mxu0 %v930
  %v1432 = vpop.f32.mrb[0].mxu0
  %v1433 = vadd.f32 %v1008, %v1432
  %v1434 = vpop.f32.mrb[0].mxu0
  %v1435 = vadd.f32 %v1012, %v1434
  %v1436 = vpop.f32.mrb[0].mxu0
  %v1437 = vpop.f32.mrb[0].mxu0
  %1438 = vdwg.mxu0
  %1439 = vmatprep.subr.bf16.mxu0 %v1234
  %1440 = vmatpush1.bf16.msra.mxu0 %v1233
  %1441 = vmatprep.subr.bf16.mxu0 %v1242
  %1442 = vmatpush1.bf16.msra.mxu0 %v1241
  %1443 = vmatprep.subr.bf16.mxu0 %v1250
  %1444 = vmatpush1.bf16.msra.mxu0 %v1249
  %1445 = vmatprep.subr.bf16.mxu0 %v1258
  %1446 = vmatpush1.bf16.msra.mxu0 %v1257
  %1447 = vmatprep.subr.bf16.mxu0 %v1266
  %1448 = vmatpush1.bf16.msra.mxu0 %v1265
  %1449 = vmatprep.subr.bf16.mxu0 %v1274
  %1450 = vmatpush1.bf16.msra.mxu0 %v1273
  %1451 = vmatprep.subr.bf16.mxu0 %v1282
  %1452 = vmatpush1.bf16.msra.mxu0 %v1281
  %1453 = vmatprep.subr.bf16.mxu0 %v1290
  %1454 = vmatpush1.bf16.msra.mxu0 %v1289
  %1455 = vmatprep.subr.bf16.mxu0 0
  %1456 = vmatpush1.bf16.msra.mxu0 0
  %1457 = vmatprep.subr.bf16.mxu0 0
  %1458 = vmatpush1.bf16.msra.mxu0 0
  %1459 = vmatprep.subr.bf16.mxu0 0
  %1460 = vmatpush1.bf16.msra.mxu0 0
  %1461 = vmatprep.subr.bf16.mxu0 0
  %1462 = vmatpush1.bf16.msra.mxu0 0
  %1463 = vmatprep.subr.bf16.mxu0 0
  %1464 = vmatpush1.bf16.msra.mxu0 0
  %1465 = vmatprep.subr.bf16.mxu0 0
  %1466 = vmatpush1.bf16.msra.mxu0 0
  %1467 = vmatprep.subr.bf16.mxu0 0
  %1468 = vmatpush1.bf16.msra.mxu0 0
  %1469 = vmatprep.subr.bf16.mxu0 0
  %1470 = vmatpush1.bf16.msra.mxu0 0
  %1471 = vmatprep.mubr.bf16.mxu0 0
  %1472 = vmatmul.mubr.bf16.gmra.mrb[0].mxu0 %v930
  %v1473 = vpop.f32.mrb[0].mxu0
  %v1474 = vadd.f32 %v1016, %v1473
  %v1475 = vpop.f32.mrb[0].mxu0
  %v1476 = vadd.f32 %v1020, %v1475
  %v1477 = vpop.f32.mrb[0].mxu0
  %v1478 = vpop.f32.mrb[0].mxu0
  %1479 = vdwg.mxu0
  %1480 = vmatprep.subr.bf16.mxu0 %v1236
  %1481 = vmatpush1.bf16.msra.mxu0 %v1235
  %1482 = vmatprep.subr.bf16.mxu0 %v1244
  %1483 = vmatpush1.bf16.msra.mxu0 %v1243
  %1484 = vmatprep.subr.bf16.mxu0 %v1252
  %1485 = vmatpush1.bf16.msra.mxu0 %v1251
  %1486 = vmatprep.subr.bf16.mxu0 %v1260
  %1487 = vmatpush1.bf16.msra.mxu0 %v1259
  %1488 = vmatprep.subr.bf16.mxu0 %v1268
  %1489 = vmatpush1.bf16.msra.mxu0 %v1267
  %1490 = vmatprep.subr.bf16.mxu0 %v1276
  %1491 = vmatpush1.bf16.msra.mxu0 %v1275
  %1492 = vmatprep.subr.bf16.mxu0 %v1284
  %1493 = vmatpush1.bf16.msra.mxu0 %v1283
  %1494 = vmatprep.subr.bf16.mxu0 %v1292
  %1495 = vmatpush1.bf16.msra.mxu0 %v1291
  %1496 = vmatprep.subr.bf16.mxu0 0
  %1497 = vmatpush1.bf16.msra.mxu0 0
  %1498 = vmatprep.subr.bf16.mxu0 0
  %1499 = vmatpush1.bf16.msra.mxu0 0
  %1500 = vmatprep.subr.bf16.mxu0 0
  %1501 = vmatpush1.bf16.msra.mxu0 0
  %1502 = vmatprep.subr.bf16.mxu0 0
  %1503 = vmatpush1.bf16.msra.mxu0 0
  %1504 = vmatprep.subr.bf16.mxu0 0
  %1505 = vmatpush1.bf16.msra.mxu0 0
  %1506 = vmatprep.subr.bf16.mxu0 0
  %1507 = vmatpush1.bf16.msra.mxu0 0
  %1508 = vmatprep.subr.bf16.mxu0 0
  %1509 = vmatpush1.bf16.msra.mxu0 0
  %1510 = vmatprep.subr.bf16.mxu0 0
  %1511 = vmatpush1.bf16.msra.mxu0 0
  %1512 = vmatprep.mubr.bf16.mxu0 0
  %1513 = vmatmul.mubr.bf16.gmra.mrb[0].mxu0 %v930
  %v1514 = vpop.f32.mrb[0].mxu0
  %v1515 = vadd.f32 %v1024, %v1514
  %v1516 = vpop.f32.mrb[0].mxu0
  %v1517 = vadd.f32 %v1028, %v1516
  %v1518 = vpop.f32.mrb[0].mxu0
  %v1519 = vpop.f32.mrb[0].mxu0
  %1520 = vdwg.mxu0
  %1521 = vst [vmem:[%s10] sm:$0xff] %v1392
  %1522 = vst [vmem:[%s10 + $0x8] sm:$0xff] %v1394
  %1523 = vst [vmem:[%s10 + $0x10] sm:$0xff] %v1433
  %1524 = vst [vmem:[%s10 + $0x18] sm:$0xff] %v1435
  %1525 = vst [vmem:[%s10 + $0x20] sm:$0xff] %v1474
  %1526 = vst [vmem:[%s10 + $0x28] sm:$0xff] %v1476
  %1527 = vst [vmem:[%s10 + $0x30] sm:$0xff] %v1515
  %1528 = vst [vmem:[%s10 + $0x38] sm:$0xff] %v1517
  %1530 = vrot.lane.b32.xlu0 %v857, 8
  %v1531 = vpop.permute.xlu0 %1530
  %v1533 = vsel %vm881, %v871, %v1531
  %vm1534 = vcmask 195584
  %1535 = vst.msk [vmem:[%s11] sm:$0xff] %vm1534, %v1533
  // Predicated region
  $region42: #{vae_forward.1} parent=0 // pred_check
    _
  $region43: #{vae_forward.1} parent=0 // pred_check_branch
    %1537 = sbr.rel (0) target = $region45
  $region44: #{vae_forward.1} parent=0 // pred_region
    _
  $region45: #{vae_forward.1} parent=0 // pred_fallthru
    _
  // Predicated region
  $region46: #{vae_forward.1} parent=0 // pred_check
    _
  $region47: #{vae_forward.1} parent=0 // pred_check_branch
    %1539 = sbr.rel (0) target = $region49
  $region48: #{vae_forward.1} parent=0 // pred_region
    _
  $region49: #{vae_forward.1} parent=0 // pred_fallthru
    _
  // Predicated region
  $region50: #{vae_forward.1} parent=0 // pred_check
    _
  $region51: #{vae_forward.1} parent=0 // pred_check_branch
    %1541 = sbr.rel (0) target = $region53
  $region52: #{vae_forward.1} parent=0 // pred_region
    _
  $region53: #{vae_forward.1} parent=0 // pred_fallthru
    _
  // Predicated region
  $region54: #{vae_forward.1} parent=0 // pred_check
    _
  $region55: #{vae_forward.1} parent=0 // pred_check_branch
    %1543 = sbr.rel (0) target = $region57
  $region56: #{vae_forward.1} parent=0 // pred_region
    _
  $region57: #{vae_forward.1} parent=0 // pred_fallthru
    _

</llo_original>
